<compile_context>
chip_gen: v6e
topology: v6e:2x2x1
jax: 0.10.0
libtpu: 0.0.40
codegen_flags: <defaults>
</compile_context>

<pallas_src>
import functools

import jax
import jax.numpy as jnp
from jax import lax
from jax.experimental import pallas as pl
from jax.experimental.pallas import tpu as pltpu

# ---- configuration (mirrors sh / args of the PyTorch module) ----
B = 2                      # args.mb_size
C, H, W = 1, 16, 16        # sh = (channels, height, width)
X_DIM = C * H * W
H_DIM = 64                 # args.hdim
S_DIM = 32                 # args.sdim
U_DIM = 6                  # type='stvae', transformation='aff' -> u_dim = 6
Z_DIM = S_DIM - U_DIM
HW = H * W


def vmem_spec():
    return pl.BlockSpec(memory_space=pltpu.MemorySpace.VMEM)


def smem_spec():
    return pl.BlockSpec(memory_space=pltpu.MemorySpace.SMEM)


# ------------------------------ fused kernel ------------------------------
def _stvae_kernel(x_ref, eps_ref, w64_ref, wx_ref, pblob_ref, bias_ref, rowsel_ref,
                  recon_ref, msv_ref, prior_ref, post_ref):
    f32 = jnp.float32

    # ---- static views into the packed operands (all slice starts 8/128 aligned) ----
    o1 = X_DIM                 # 256
    o2 = o1 + H_DIM            # 320
    o3 = o2 + H_DIM            # 384
    o4 = o3 + S_DIM            # 416
    o5 = o4 + H_DIM            # 480
    w1 = w64_ref[0:o1, :]      # (256, 64)  encoder.x2h
    w2 = w64_ref[o1:o2, :]     # (64, 64)   encoder.h2he
    wmv = w64_ref[o2:o3, :]    # (64, 64)   h2smu | h2svar (fused)
    wd = w64_ref[o3:o4, :]     # (32, 64)   s2s folded into z2h (zero-padded rows 0:6)
    wh = w64_ref[o4:o5, :]     # (64, 64)   decoder.h2hd

    b1 = bias_ref[0:1, 0:H_DIM]
    b2 = bias_ref[1:2, 0:H_DIM]
    bmv = bias_ref[2:3, 0:2 * S_DIM]
    bd = bias_ref[3:4, 0:H_DIM]
    bh = bias_ref[4:5, 0:H_DIM]
    b_x = bias_ref[5:6, 0:X_DIM]
    cg = bias_ref[6:7, 0:2 * HW]
    thr = bias_ref[7:8, 0:2 * S_DIM]       # [-1e30]*S | [-6]*S

    pxy = pblob_ref[0:S_DIM, :]            # (32, 512)  s2s folded into affine basis
    mw = pblob_ref[S_DIM:S_DIM + W, 0:HW]  # (16, 256)  [p % W == j]
    rs = rowsel_ref[...]                   # (256, 16)  [p // W == i]

    x = x_ref[...]                                                        # (B, X_DIM)

    # ------------------- encoder: x2h -> relu -> h2he -> relu -------------------
    h = jnp.maximum(jnp.dot(x, w1, preferred_element_type=f32) + b1, 0.0)
    h = jnp.maximum(jnp.dot(h, w2, preferred_element_type=f32) + b2, 0.0)
    # fused h2smu | h2svar: one dot; F.threshold(v,-6,-6) == max(v,-6) applied only
    # to the logvar lanes via the packed threshold row (mu lanes use -1e30).
    mv = jnp.dot(h, wmv, preferred_element_type=f32) + bmv                # (B, 2S)
    msv = jnp.maximum(mv, thr)
    msv_ref[...] = msv                                                    # one store
    smu = msv[:, 0:S_DIM]
    slv = msv[:, S_DIM:2 * S_DIM]

    # --------------- reparameterized sample + latent scalar terms ---------------
    sd = jnp.exp(0.5 * slv)
    s = smu + sd * eps_ref[...]
    prior_ref[0, 0] = jnp.sum(s * s * 0.5)                                # ss_prior
    d = s - smu
    post_ref[0, 0] = -jnp.sum(0.5 * (d * d / (sd * sd) + slv))            # ss_posterior

    # ----------- decoder MLP (s2s pre-folded): relu -> relu -> sigmoid -----------
    hd = jnp.maximum(jnp.dot(s, wd, preferred_element_type=f32) + bd, 0.0)
    hd = jnp.maximum(jnp.dot(hd, wh, preferred_element_type=f32) + bh, 0.0)
    xd = jax.nn.sigmoid(jnp.dot(hd, wx_ref[...], preferred_element_type=f32) + b_x)
    xd = jnp.clip(xd, 1e-6, 1.0 - 1e-6)            # torch.clamp in forward_decoder

    # -------- STN: affine_grid(align_corners=True) + grid_sample(border) --------
    # gxy = (s2s(s)) @ [xn,yn,1 basis] + identity contribution, folded host-side.
    gxy = jnp.dot(s, pxy, preferred_element_type=f32) + cg                # (B, 2*HW)
    gx = gxy[:, 0:HW]
    gy = gxy[:, HW:2 * HW]
    ix = jnp.clip((gx + 1.0) * (0.5 * (W - 1)), 0.0, W - 1.0)   # border padding
    iy = jnp.clip((gy + 1.0) * (0.5 * (H - 1)), 0.0, H - 1.0)

    i_f = lax.broadcasted_iota(jnp.int32, (H, HW), 0).astype(f32)  # source row idx
    j_f = lax.broadcasted_iota(jnp.int32, (W, HW), 0).astype(f32)  # source col idx

    rows = []
    for b in range(B):                      # B tiny & static -> unrolled
        # separable bilinear weights as tent functions (2 non-zeros per column)
        wy_t = jnp.maximum(1.0 - jnp.abs(i_f - iy[b:b + 1, :]), 0.0)     # (H, HW)
        wx_t = jnp.maximum(1.0 - jnp.abs(j_f - ix[b:b + 1, :]), 0.0)     # (W, HW)
        for c in range(C):
            xr = xd[b:b + 1, c * HW:(c + 1) * HW]                        # (1, HW)
            # img_t[j, i] = xd[b, c*HW + i*W + j]  (no in-kernel reshape/relayout)
            img_t = jnp.dot(mw * xr, rs, preferred_element_type=f32)     # (W, H)
            bm = jnp.dot(img_t, wy_t, preferred_element_type=f32)        # (W, HW)
            out = jnp.sum(wx_t * bm, axis=0, keepdims=True)              # (1, HW)
            # final clamp of decoder_and_trans
            rows.append(jnp.clip(out, 1e-6, 1.0 - 1e-6))
    recon_ref[...] = jnp.concatenate(rows, axis=0)                       # one store


# --------------------------- constant STN tables ---------------------------
def _stn_constants():
    p = jnp.arange(HW)
    jj = (p % W).astype(jnp.float32)
    ii = (p // W).astype(jnp.float32)
    xn = 2.0 * jj / (W - 1) - 1.0          # normalized x (align_corners=True)
    yn = 2.0 * ii / (H - 1) - 1.0          # normalized y
    px = jnp.zeros((S_DIM, HW), jnp.float32)
    px = px.at[0].set(xn).at[1].set(yn).at[2].set(1.0)
    py = jnp.zeros((S_DIM, HW), jnp.float32)
    py = py.at[3].set(xn).at[4].set(yn).at[5].set(1.0)
    pxy = jnp.concatenate([px, py], axis=1)                        # (S_DIM, 2*HW)
    xnyn = jnp.concatenate([xn, yn])[None, :]                      # (1, 2*HW)
    maskw = (p[None, :] % W == jnp.arange(W)[:, None]).astype(jnp.float32)    # (W, HW)
    rowsel = (p[:, None] // W == jnp.arange(H)[None, :]).astype(jnp.float32)  # (HW, H)
    return pxy, xnyn, maskw, rowsel


# ------------------------------ wrapper ------------------------------
def stvae_forward(x, eps, params):
    """Returns (recon_x, s_mu, s_logvar, ss_prior, ss_posterior)."""
    x_flat = x.reshape(B, X_DIM)

    # ---- host-side folding (params are closure constants under jit -> folded) ----
    wmv = jnp.concatenate([params['h2smu_w'], params['h2svar_w']], axis=1)   # (64,64)
    bmv = jnp.concatenate([params['h2smu_b'], params['h2svar_b']], axis=1)   # (1,64)
    # z2h zero-padded so it consumes the full s2s output, then s2s folded in.
    wzp = jnp.zeros((S_DIM, H_DIM), jnp.float32).at[U_DIM:].set(params['z2h_w'])
    w_dec = params['s2s_w'] @ wzp                                            # (32,64)
    b_dec = params['s2s_b'] @ wzp + params['z2h_b']                          # (1,64)
    pxy, xnyn, maskw, rowsel = _stn_constants()
    p_fused = params['s2s_w'] @ pxy                                          # (32,512)
    c_grid = params['s2s_b'] @ pxy + xnyn                                    # (1,512)

    # ---- pack everything constant into few DMA-friendly blobs ----
    w64 = jnp.concatenate([params['x2h_w'], params['h2he_w'], wmv, w_dec,
                           params['h2hd_w']], axis=0)                        # (480,64)
    pblob = jnp.concatenate(
        [p_fused, jnp.pad(maskw, ((0, 0), (0, 2 * HW - HW)))], axis=0)       # (48,512)

    def _row(v):
        return jnp.pad(v, ((0, 0), (0, 2 * HW - v.shape[1])))

    thresh = jnp.concatenate([jnp.full((1, S_DIM), -1e30, jnp.float32),
                              jnp.full((1, S_DIM), -6.0, jnp.float32)], axis=1)
    bias = jnp.concatenate(
        [_row(params['x2h_b']), _row(params['h2he_b']), _row(bmv), _row(b_dec),
         _row(params['h2hd_b']), _row(params['h2x_b']), _row(c_grid),
         _row(thresh)], axis=0)                                              # (8,512)

    out_shape = (
        jax.ShapeDtypeStruct((B * C, HW), jnp.float32),     # recon (flat)
        jax.ShapeDtypeStruct((B, 2 * S_DIM), jnp.float32),  # [s_mu | s_logvar]
        jax.ShapeDtypeStruct((1, 1), jnp.float32),          # ss_prior
        jax.ShapeDtypeStruct((1, 1), jnp.float32),          # ss_posterior
    )
    recon, msv, ss_prior, ss_post = pl.pallas_call(
        _stvae_kernel,
        out_shape=out_shape,
        in_specs=[vmem_spec() for _ in range(7)],
        out_specs=(vmem_spec(), vmem_spec(), smem_spec(), smem_spec()),
    )(x_flat, eps, w64, params['h2x_w'], pblob, bias, rowsel)

    smu = msv[:, 0:S_DIM]
    slv = msv[:, S_DIM:2 * S_DIM]
    return recon.reshape(B, C, H, W), smu, slv, ss_prior[0, 0], ss_post[0, 0]


# --------------------------- deterministic params ---------------------------
def _linear(key, fan_in, fan_out):
    kw, kb = jax.random.split(key)
    bound = float(fan_in) ** -0.5
    w = jax.random.uniform(kw, (fan_in, fan_out), jnp.float32, -bound, bound)
    b = jax.random.uniform(kb, (1, fan_out), jnp.float32, -bound, bound)
    return w, b


def init_params(key):
    keys = jax.random.split(key, 8)
    p = {}
    p['x2h_w'], p['x2h_b'] = _linear(keys[0], X_DIM, H_DIM)        # encoder.x2h
    p['h2he_w'], p['h2he_b'] = _linear(keys[1], H_DIM, H_DIM)      # encoder.h2he
    p['h2smu_w'], p['h2smu_b'] = _linear(keys[2], H_DIM, S_DIM)    # toNorm.h2smu
    p['h2svar_w'], p['h2svar_b'] = _linear(keys[3], H_DIM, S_DIM)  # toNorm.h2svar
    p['s2s_w'], p['s2s_b'] = _linear(keys[4], S_DIM, S_DIM)        # decoder.s2s
    p['z2h_w'], p['z2h_b'] = _linear(keys[5], Z_DIM, H_DIM)        # fromNorm.z2h
    p['h2hd_w'], p['h2hd_b'] = _linear(keys[6], H_DIM, H_DIM)      # decoder.h2hd
    p['h2x_w'], p['h2x_b'] = _linear(keys[7], H_DIM, X_DIM)        # decoder.h2x
    return p


if __name__ == "__main__":
    key = jax.random.PRNGKey(0)
    k_x, k_eps, k_p = jax.random.split(key, 3)
    x = jax.random.uniform(k_x, (B, C, H, W), dtype=jnp.float32)
    # TODO(synk): torch.randn inside .sample() replaced with a deterministic
    # host-provided eps (reparameterization noise).
    eps = jax.random.normal(k_eps, (B, S_DIM), dtype=jnp.float32)
    params = init_params(k_p)

    fwd = jax.jit(functools.partial(stvae_forward, params=params))
    recon, s_mu, s_logvar, ss_prior, ss_post = jax.block_until_ready(fwd(x, eps))

    assert recon.shape == (B, C, H, W)
    assert s_mu.shape == (B, S_DIM) and s_logvar.shape == (B, S_DIM)
    assert jnp.all(jnp.isfinite(recon))
    assert jnp.all(recon >= 1e-6) and jnp.all(recon <= 1.0 - 1e-6)
    assert jnp.all(s_logvar >= -6.0)
    assert jnp.isfinite(ss_prior) and jnp.isfinite(ss_post)
    print("KERNEL_OK")
</pallas_src>

<mosaic_0001>
module attributes {stable_mosaic.version = 11 : i64} {
  func.func @_stvae_kernel(%arg0: memref<2x256xf32, #tpu.memory_space<vmem>>, %arg1: memref<2x32xf32, #tpu.memory_space<vmem>>, %arg2: memref<480x64xf32, #tpu.memory_space<vmem>>, %arg3: memref<64x256xf32, #tpu.memory_space<vmem>>, %arg4: memref<48x512xf32, #tpu.memory_space<vmem>>, %arg5: memref<8x512xf32, #tpu.memory_space<vmem>>, %arg6: memref<256x16xf32, #tpu.memory_space<vmem>>, %arg7: memref<2x256xf32, #tpu.memory_space<vmem>>, %arg8: memref<2x64xf32, #tpu.memory_space<vmem>>, %arg9: memref<1x1xf32, #tpu.memory_space<smem>>, %arg10: memref<1x1xf32, #tpu.memory_space<smem>>) attributes {dimension_semantics = [], scalar_prefetch = 0 : i64, scratch_operands = 0 : i64, tpu.core_type = #tpu.core_type<tc>} {
    %c0 = arith.constant 0 : index
    %c0_0 = arith.constant 0 : index
    %0 = vector.load %arg2[%c0, %c0_0] : memref<480x64xf32, #tpu.memory_space<vmem>>, vector<256x64xf32>
    %c256 = arith.constant 256 : index
    %c0_1 = arith.constant 0 : index
    %1 = vector.load %arg2[%c256, %c0_1] : memref<480x64xf32, #tpu.memory_space<vmem>>, vector<64x64xf32>
    %c320 = arith.constant 320 : index
    %c0_2 = arith.constant 0 : index
    %2 = vector.load %arg2[%c320, %c0_2] : memref<480x64xf32, #tpu.memory_space<vmem>>, vector<64x64xf32>
    %c384 = arith.constant 384 : index
    %c0_3 = arith.constant 0 : index
    %3 = vector.load %arg2[%c384, %c0_3] : memref<480x64xf32, #tpu.memory_space<vmem>>, vector<32x64xf32>
    %c416 = arith.constant 416 : index
    %c0_4 = arith.constant 0 : index
    %4 = vector.load %arg2[%c416, %c0_4] : memref<480x64xf32, #tpu.memory_space<vmem>>, vector<64x64xf32>
    %c0_5 = arith.constant 0 : index
    %c0_6 = arith.constant 0 : index
    %5 = vector.load %arg5[%c0_5, %c0_6] : memref<8x512xf32, #tpu.memory_space<vmem>>, vector<1x64xf32>
    %c1 = arith.constant 1 : index
    %c0_7 = arith.constant 0 : index
    %6 = vector.load %arg5[%c1, %c0_7] : memref<8x512xf32, #tpu.memory_space<vmem>>, vector<1x64xf32>
    %c2 = arith.constant 2 : index
    %c0_8 = arith.constant 0 : index
    %7 = vector.load %arg5[%c2, %c0_8] : memref<8x512xf32, #tpu.memory_space<vmem>>, vector<1x64xf32>
    %c3 = arith.constant 3 : index
    %c0_9 = arith.constant 0 : index
    %8 = vector.load %arg5[%c3, %c0_9] : memref<8x512xf32, #tpu.memory_space<vmem>>, vector<1x64xf32>
    %c4 = arith.constant 4 : index
    %c0_10 = arith.constant 0 : index
    %9 = vector.load %arg5[%c4, %c0_10] : memref<8x512xf32, #tpu.memory_space<vmem>>, vector<1x64xf32>
    %c5 = arith.constant 5 : index
    %c0_11 = arith.constant 0 : index
    %10 = vector.load %arg5[%c5, %c0_11] : memref<8x512xf32, #tpu.memory_space<vmem>>, vector<1x256xf32>
    %c6 = arith.constant 6 : index
    %c0_12 = arith.constant 0 : index
    %11 = vector.load %arg5[%c6, %c0_12] : memref<8x512xf32, #tpu.memory_space<vmem>>, vector<1x512xf32>
    %c7 = arith.constant 7 : index
    %c0_13 = arith.constant 0 : index
    %12 = vector.load %arg5[%c7, %c0_13] : memref<8x512xf32, #tpu.memory_space<vmem>>, vector<1x64xf32>
    %c0_14 = arith.constant 0 : index
    %c0_15 = arith.constant 0 : index
    %13 = vector.load %arg4[%c0_14, %c0_15] : memref<48x512xf32, #tpu.memory_space<vmem>>, vector<32x512xf32>
    %c32 = arith.constant 32 : index
    %c0_16 = arith.constant 0 : index
    %14 = vector.load %arg4[%c32, %c0_16] : memref<48x512xf32, #tpu.memory_space<vmem>>, vector<16x256xf32>
    %c0_17 = arith.constant 0 : index
    %c0_18 = arith.constant 0 : index
    %15 = vector.load %arg6[%c0_17, %c0_18] : memref<256x16xf32, #tpu.memory_space<vmem>>, vector<256x16xf32>
    %c0_19 = arith.constant 0 : index
    %c0_20 = arith.constant 0 : index
    %16 = vector.load %arg0[%c0_19, %c0_20] : memref<2x256xf32, #tpu.memory_space<vmem>>, vector<2x256xf32>
    %cst = arith.constant dense<0.000000e+00> : vector<2x64xf32>
    %17 = tpu.matmul %16, %0, %cst {dimension_numbers = #tpu.dot_dimension_numbers<[1], [0], [0], [1], [0, 0, 1, 1], [], []>} : vector<2x256xf32>, vector<256x64xf32>, vector<2x64xf32> -> vector<2x64xf32>
    %18 = vector.broadcast %5 : vector<1x64xf32> to vector<2x64xf32>
    %19 = arith.addf %17, %18 : vector<2x64xf32>
    %cst_21 = arith.constant 0.000000e+00 : f32
    %20 = vector.broadcast %cst_21 : f32 to vector<2x64xf32>
    %21 = arith.maximumf %19, %20 : vector<2x64xf32>
    %cst_22 = arith.constant dense<0.000000e+00> : vector<2x64xf32>
    %22 = tpu.matmul %21, %1, %cst_22 {dimension_numbers = #tpu.dot_dimension_numbers<[1], [0], [0], [1], [0, 0, 1, 1], [], []>} : vector<2x64xf32>, vector<64x64xf32>, vector<2x64xf32> -> vector<2x64xf32>
    %23 = vector.broadcast %6 : vector<1x64xf32> to vector<2x64xf32>
    %24 = arith.addf %22, %23 : vector<2x64xf32>
    %cst_23 = arith.constant 0.000000e+00 : f32
    %25 = vector.broadcast %cst_23 : f32 to vector<2x64xf32>
    %26 = arith.maximumf %24, %25 : vector<2x64xf32>
    %cst_24 = arith.constant dense<0.000000e+00> : vector<2x64xf32>
    %27 = tpu.matmul %26, %2, %cst_24 {dimension_numbers = #tpu.dot_dimension_numbers<[1], [0], [0], [1], [0, 0, 1, 1], [], []>} : vector<2x64xf32>, vector<64x64xf32>, vector<2x64xf32> -> vector<2x64xf32>
    %28 = vector.broadcast %7 : vector<1x64xf32> to vector<2x64xf32>
    %29 = arith.addf %27, %28 : vector<2x64xf32>
    %30 = vector.broadcast %12 : vector<1x64xf32> to vector<2x64xf32>
    %31 = arith.maximumf %29, %30 : vector<2x64xf32>
    %c0_25 = arith.constant 0 : index
    %c0_26 = arith.constant 0 : index
    %32 = vector.load %arg8[%c0_25, %c0_26] : memref<2x64xf32, #tpu.memory_space<vmem>>, vector<2x64xf32>
    tpu.vector_store %arg8[%c0_25, %c0_26], %31 {strides = array<i32>} : memref<2x64xf32, #tpu.memory_space<vmem>>, vector<2x64xf32>,
    %33 = vector.extract_strided_slice %31 {offsets = [0, 0], sizes = [2, 32], strides = [1, 1]} : vector<2x64xf32> to vector<2x32xf32>
    %34 = vector.extract_strided_slice %31 {offsets = [0, 32], sizes = [2, 32], strides = [1, 1]} : vector<2x64xf32> to vector<2x32xf32>
    %cst_27 = arith.constant 5.000000e-01 : f32
    %35 = vector.broadcast %cst_27 : f32 to vector<2x32xf32>
    %36 = arith.mulf %35, %34 : vector<2x32xf32>
    %37 = math.exp %36 : vector<2x32xf32>
    %c0_28 = arith.constant 0 : index
    %c0_29 = arith.constant 0 : index
    %38 = vector.load %arg1[%c0_28, %c0_29] : memref<2x32xf32, #tpu.memory_space<vmem>>, vector<2x32xf32>
    %39 = arith.mulf %37, %38 : vector<2x32xf32>
    %40 = arith.addf %33, %39 : vector<2x32xf32>
    %41 = arith.mulf %40, %40 : vector<2x32xf32>
    %cst_30 = arith.constant 5.000000e-01 : f32
    %42 = vector.broadcast %cst_30 : f32 to vector<2x32xf32>
    %43 = arith.mulf %41, %42 : vector<2x32xf32>
    %44 = vector.shape_cast %43 : vector<2x32xf32> to vector<1x2x32xf32>
    %cst_31 = arith.constant dense<0.000000e+00> : vector<1xf32>
    %45 = vector.multi_reduction <add>, %44, %cst_31 [1, 2] : vector<1x2x32xf32> to vector<1xf32>
    %46 = vector.shape_cast %45 : vector<1xf32> to vector<1x1x1xf32>
    %47 = vector.extract %46[0, 0, 0] : f32 from vector<1x1x1xf32>
    %c0_32 = arith.constant 0 : index
    %c0_33 = arith.constant 0 : index
    %48 = memref.load %arg9[%c0_32, %c0_33] : memref<1x1xf32, #tpu.memory_space<smem>>
    memref.store %47, %arg9[%c0_32, %c0_33] : memref<1x1xf32, #tpu.memory_space<smem>>
    %49 = arith.subf %40, %33 : vector<2x32xf32>
    %50 = arith.mulf %49, %49 : vector<2x32xf32>
    %51 = arith.mulf %37, %37 : vector<2x32xf32>
    %52 = arith.divf %50, %51 : vector<2x32xf32>
    %53 = arith.addf %52, %34 : vector<2x32xf32>
    %cst_34 = arith.constant 5.000000e-01 : f32
    %54 = vector.broadcast %cst_34 : f32 to vector<2x32xf32>
    %55 = arith.mulf %54, %53 : vector<2x32xf32>
    %56 = vector.shape_cast %55 : vector<2x32xf32> to vector<1x2x32xf32>
    %cst_35 = arith.constant dense<0.000000e+00> : vector<1xf32>
    %57 = vector.multi_reduction <add>, %56, %cst_35 [1, 2] : vector<1x2x32xf32> to vector<1xf32>
    %58 = vector.shape_cast %57 : vector<1xf32> to vector<1x1x1xf32>
    %59 = vector.extract %58[0, 0, 0] : f32 from vector<1x1x1xf32>
    %cst_36 = arith.constant 0.000000e+00 : f32
    %60 = arith.subf %cst_36, %59 : f32
    %c0_37 = arith.constant 0 : index
    %c0_38 = arith.constant 0 : index
    %61 = memref.load %arg10[%c0_37, %c0_38] : memref<1x1xf32, #tpu.memory_space<smem>>
    memref.store %60, %arg10[%c0_37, %c0_38] : memref<1x1xf32, #tpu.memory_space<smem>>
    %cst_39 = arith.constant dense<0.000000e+00> : vector<2x64xf32>
    %62 = tpu.matmul %40, %3, %cst_39 {dimension_numbers = #tpu.dot_dimension_numbers<[1], [0], [0], [1], [0, 0, 1, 1], [], []>} : vector<2x32xf32>, vector<32x64xf32>, vector<2x64xf32> -> vector<2x64xf32>
    %63 = vector.broadcast %8 : vector<1x64xf32> to vector<2x64xf32>
    %64 = arith.addf %62, %63 : vector<2x64xf32>
    %cst_40 = arith.constant 0.000000e+00 : f32
    %65 = vector.broadcast %cst_40 : f32 to vector<2x64xf32>
    %66 = arith.maximumf %64, %65 : vector<2x64xf32>
    %cst_41 = arith.constant dense<0.000000e+00> : vector<2x64xf32>
    %67 = tpu.matmul %66, %4, %cst_41 {dimension_numbers = #tpu.dot_dimension_numbers<[1], [0], [0], [1], [0, 0, 1, 1], [], []>} : vector<2x64xf32>, vector<64x64xf32>, vector<2x64xf32> -> vector<2x64xf32>
    %68 = vector.broadcast %9 : vector<1x64xf32> to vector<2x64xf32>
    %69 = arith.addf %67, %68 : vector<2x64xf32>
    %cst_42 = arith.constant 0.000000e+00 : f32
    %70 = vector.broadcast %cst_42 : f32 to vector<2x64xf32>
    %71 = arith.maximumf %69, %70 : vector<2x64xf32>
    %c0_43 = arith.constant 0 : index
    %c0_44 = arith.constant 0 : index
    %72 = vector.load %arg3[%c0_43, %c0_44] : memref<64x256xf32, #tpu.memory_space<vmem>>, vector<64x256xf32>
    %cst_45 = arith.constant dense<0.000000e+00> : vector<2x256xf32>
    %73 = tpu.matmul %71, %72, %cst_45 {dimension_numbers = #tpu.dot_dimension_numbers<[1], [0], [0], [1], [0, 0, 1, 1], [], []>} : vector<2x64xf32>, vector<64x256xf32>, vector<2x256xf32> -> vector<2x256xf32>
    %74 = vector.broadcast %10 : vector<1x256xf32> to vector<2x256xf32>
    %75 = arith.addf %73, %74 : vector<2x256xf32>
    %76 = arith.negf %75 : vector<2x256xf32>
    %77 = math.exp %76 : vector<2x256xf32>
    %cst_46 = arith.constant 1.000000e+00 : f32
    %78 = vector.broadcast %cst_46 : f32 to vector<2x256xf32>
    %79 = arith.addf %78, %77 : vector<2x256xf32>
    %80 = arith.divf %78, %79 : vector<2x256xf32>
    %cst_47 = arith.constant 9.99999997E-7 : f32
    %cst_48 = arith.constant 0.999998986 : f32
    %81 = vector.broadcast %cst_47 : f32 to vector<2x256xf32>
    %82 = arith.maximumf %81, %80 : vector<2x256xf32>
    %83 = vector.broadcast %cst_48 : f32 to vector<2x256xf32>
    %84 = arith.minimumf %83, %82 : vector<2x256xf32>
    %cst_49 = arith.constant dense<0.000000e+00> : vector<2x512xf32>
    %85 = tpu.matmul %40, %13, %cst_49 {dimension_numbers = #tpu.dot_dimension_numbers<[1], [0], [0], [1], [0, 0, 1, 1], [], []>} : vector<2x32xf32>, vector<32x512xf32>, vector<2x512xf32> -> vector<2x512xf32>
    %86 = vector.broadcast %11 : vector<1x512xf32> to vector<2x512xf32>
    %87 = arith.addf %85, %86 : vector<2x512xf32>
    %88 = vector.extract_strided_slice %87 {offsets = [0, 0], sizes = [2, 256], strides = [1, 1]} : vector<2x512xf32> to vector<2x256xf32>
    %89 = vector.extract_strided_slice %87 {offsets = [0, 256], sizes = [2, 256], strides = [1, 1]} : vector<2x512xf32> to vector<2x256xf32>
    %cst_50 = arith.constant 1.000000e+00 : f32
    %90 = vector.broadcast %cst_50 : f32 to vector<2x256xf32>
    %91 = arith.addf %88, %90 : vector<2x256xf32>
    %cst_51 = arith.constant 7.500000e+00 : f32
    %92 = vector.broadcast %cst_51 : f32 to vector<2x256xf32>
    %93 = arith.mulf %91, %92 : vector<2x256xf32>
    %cst_52 = arith.constant 0.000000e+00 : f32
    %cst_53 = arith.constant 1.500000e+01 : f32
    %94 = vector.broadcast %cst_52 : f32 to vector<2x256xf32>
    %95 = arith.maximumf %94, %93 : vector<2x256xf32>
    %96 = vector.broadcast %cst_53 : f32 to vector<2x256xf32>
    %97 = arith.minimumf %96, %95 : vector<2x256xf32>
    %cst_54 = arith.constant 1.000000e+00 : f32
    %98 = vector.broadcast %cst_54 : f32 to vector<2x256xf32>
    %99 = arith.addf %89, %98 : vector<2x256xf32>
    %cst_55 = arith.constant 7.500000e+00 : f32
    %100 = vector.broadcast %cst_55 : f32 to vector<2x256xf32>
    %101 = arith.mulf %99, %100 : vector<2x256xf32>
    %cst_56 = arith.constant 0.000000e+00 : f32
    %cst_57 = arith.constant 1.500000e+01 : f32
    %102 = vector.broadcast %cst_56 : f32 to vector<2x256xf32>
    %103 = arith.maximumf %102, %101 : vector<2x256xf32>
    %104 = vector.broadcast %cst_57 : f32 to vector<2x256xf32>
    %105 = arith.minimumf %104, %103 : vector<2x256xf32>
    %106 = tpu.iota {dimensions = array<i32: 0>} : vector<16x256xi32>
    %107 = arith.sitofp %106 : vector<16x256xi32> to vector<16x256xf32>
    %108 = tpu.iota {dimensions = array<i32: 0>} : vector<16x256xi32>
    %109 = arith.sitofp %108 : vector<16x256xi32> to vector<16x256xf32>
    %110 = vector.extract_strided_slice %105 {offsets = [0, 0], sizes = [1, 256], strides = [1, 1]} : vector<2x256xf32> to vector<1x256xf32>
    %111 = vector.broadcast %110 : vector<1x256xf32> to vector<16x256xf32>
    %112 = arith.subf %107, %111 : vector<16x256xf32>
    %113 = math.absf %112 : vector<16x256xf32>
    %cst_58 = arith.constant 1.000000e+00 : f32
    %114 = vector.broadcast %cst_58 : f32 to vector<16x256xf32>
    %115 = arith.subf %114, %113 : vector<16x256xf32>
    %cst_59 = arith.constant 0.000000e+00 : f32
    %116 = vector.broadcast %cst_59 : f32 to vector<16x256xf32>
    %117 = arith.maximumf %115, %116 : vector<16x256xf32>
    %118 = vector.extract_strided_slice %97 {offsets = [0, 0], sizes = [1, 256], strides = [1, 1]} : vector<2x256xf32> to vector<1x256xf32>
    %119 = vector.broadcast %118 : vector<1x256xf32> to vector<16x256xf32>
    %120 = arith.subf %109, %119 : vector<16x256xf32>
    %121 = math.absf %120 : vector<16x256xf32>
    %cst_60 = arith.constant 1.000000e+00 : f32
    %122 = vector.broadcast %cst_60 : f32 to vector<16x256xf32>
    %123 = arith.subf %122, %121 : vector<16x256xf32>
    %cst_61 = arith.constant 0.000000e+00 : f32
    %124 = vector.broadcast %cst_61 : f32 to vector<16x256xf32>
    %125 = arith.maximumf %123, %124 : vector<16x256xf32>
    %126 = vector.extract_strided_slice %84 {offsets = [0, 0], sizes = [1, 256], strides = [1, 1]} : vector<2x256xf32> to vector<1x256xf32>
    %127 = vector.broadcast %126 : vector<1x256xf32> to vector<16x256xf32>
    %128 = arith.mulf %14, %127 : vector<16x256xf32>
    %cst_62 = arith.constant dense<0.000000e+00> : vector<16x16xf32>
    %129 = tpu.matmul %128, %15, %cst_62 {dimension_numbers = #tpu.dot_dimension_numbers<[1], [0], [0], [1], [0, 0, 1, 1], [], []>} : vector<16x256xf32>, vector<256x16xf32>, vector<16x16xf32> -> vector<16x16xf32>
    %cst_63 = arith.constant dense<0.000000e+00> : vector<16x256xf32>
    %130 = tpu.matmul %129, %117, %cst_63 {dimension_numbers = #tpu.dot_dimension_numbers<[1], [0], [0], [1], [0, 0, 1, 1], [], []>} : vector<16x16xf32>, vector<16x256xf32>, vector<16x256xf32> -> vector<16x256xf32>
    %131 = arith.mulf %125, %130 : vector<16x256xf32>
    %cst_64 = arith.constant dense<0.000000e+00> : vector<256xf32>
    %132 = vector.multi_reduction <add>, %131, %cst_64 [0] : vector<16x256xf32> to vector<256xf32>
    %133 = vector.shape_cast %132 : vector<256xf32> to vector<1x256xf32>
    %cst_65 = arith.constant 9.99999997E-7 : f32
    %cst_66 = arith.constant 0.999998986 : f32
    %134 = vector.broadcast %cst_65 : f32 to vector<1x256xf32>
    %135 = arith.maximumf %134, %133 : vector<1x256xf32>
    %136 = vector.broadcast %cst_66 : f32 to vector<1x256xf32>
    %137 = arith.minimumf %136, %135 : vector<1x256xf32>
    %138 = vector.extract_strided_slice %105 {offsets = [1, 0], sizes = [1, 256], strides = [1, 1]} : vector<2x256xf32> to vector<1x256xf32>
    %139 = vector.broadcast %138 : vector<1x256xf32> to vector<16x256xf32>
    %140 = arith.subf %107, %139 : vector<16x256xf32>
    %141 = math.absf %140 : vector<16x256xf32>
    %cst_67 = arith.constant 1.000000e+00 : f32
    %142 = vector.broadcast %cst_67 : f32 to vector<16x256xf32>
    %143 = arith.subf %142, %141 : vector<16x256xf32>
    %cst_68 = arith.constant 0.000000e+00 : f32
    %144 = vector.broadcast %cst_68 : f32 to vector<16x256xf32>
    %145 = arith.maximumf %143, %144 : vector<16x256xf32>
    %146 = vector.extract_strided_slice %97 {offsets = [1, 0], sizes = [1, 256], strides = [1, 1]} : vector<2x256xf32> to vector<1x256xf32>
    %147 = vector.broadcast %146 : vector<1x256xf32> to vector<16x256xf32>
    %148 = arith.subf %109, %147 : vector<16x256xf32>
    %149 = math.absf %148 : vector<16x256xf32>
    %cst_69 = arith.constant 1.000000e+00 : f32
    %150 = vector.broadcast %cst_69 : f32 to vector<16x256xf32>
    %151 = arith.subf %150, %149 : vector<16x256xf32>
    %cst_70 = arith.constant 0.000000e+00 : f32
    %152 = vector.broadcast %cst_70 : f32 to vector<16x256xf32>
    %153 = arith.maximumf %151, %152 : vector<16x256xf32>
    %154 = vector.extract_strided_slice %84 {offsets = [1, 0], sizes = [1, 256], strides = [1, 1]} : vector<2x256xf32> to vector<1x256xf32>
    %155 = vector.broadcast %154 : vector<1x256xf32> to vector<16x256xf32>
    %156 = arith.mulf %14, %155 : vector<16x256xf32>
    %cst_71 = arith.constant dense<0.000000e+00> : vector<16x16xf32>
    %157 = tpu.matmul %156, %15, %cst_71 {dimension_numbers = #tpu.dot_dimension_numbers<[1], [0], [0], [1], [0, 0, 1, 1], [], []>} : vector<16x256xf32>, vector<256x16xf32>, vector<16x16xf32> -> vector<16x16xf32>
    %cst_72 = arith.constant dense<0.000000e+00> : vector<16x256xf32>
    %158 = tpu.matmul %157, %145, %cst_72 {dimension_numbers = #tpu.dot_dimension_numbers<[1], [0], [0], [1], [0, 0, 1, 1], [], []>} : vector<16x16xf32>, vector<16x256xf32>, vector<16x256xf32> -> vector<16x256xf32>
    %159 = arith.mulf %153, %158 : vector<16x256xf32>
    %cst_73 = arith.constant dense<0.000000e+00> : vector<256xf32>
    %160 = vector.multi_reduction <add>, %159, %cst_73 [0] : vector<16x256xf32> to vector<256xf32>
    %161 = vector.shape_cast %160 : vector<256xf32> to vector<1x256xf32>
    %cst_74 = arith.constant 9.99999997E-7 : f32
    %cst_75 = arith.constant 0.999998986 : f32
    %162 = vector.broadcast %cst_74 : f32 to vector<1x256xf32>
    %163 = arith.maximumf %162, %161 : vector<1x256xf32>
    %164 = vector.broadcast %cst_75 : f32 to vector<1x256xf32>
    %165 = arith.minimumf %164, %163 : vector<1x256xf32>
    %166 = tpu.concatenate %137, %165 in 0 : vector<1x256xf32>, vector<1x256xf32> -> vector<2x256xf32>
    %c0_76 = arith.constant 0 : index
    %c0_77 = arith.constant 0 : index
    %167 = vector.load %arg7[%c0_76, %c0_77] : memref<2x256xf32, #tpu.memory_space<vmem>>, vector<2x256xf32>
    tpu.vector_store %arg7[%c0_76, %c0_77], %166 {strides = array<i32>} : memref<2x256xf32, #tpu.memory_space<vmem>>, vector<2x256xf32>,
    return
  }
}

</mosaic_0001>

<llo_original>
// kernel: stvae_forward.1
$region0: #{stvae_forward.1}
  #allocation0 [shape = 'u32[]', space=smem, size = 0x4, offset = 0x4, fixed_abs, tag = 'smem constant byte address 0x4 - core index']
  #allocation1 [shape = 'u32[144,128]{1,0:T(1,128)}', space=vmem, size = 0x12000, scoped, tag = 'internal scratch']
  %s0 = inlined_call_operand.vmem [shape: f32[2,256], index: 0, kind: input, shape index: {}]
  %s1 = inlined_call_operand.vmem [shape: f32[2,32], index: 1, kind: input, shape index: {}]
  %s2 = inlined_call_operand.vmem [shape: f32[480,64], index: 2, kind: input, shape index: {}]
  %s3 = inlined_call_operand.vmem [shape: f32[64,256], index: 3, kind: input, shape index: {}]
  %s4 = inlined_call_operand.vmem [shape: f32[48,512], index: 4, kind: input, shape index: {}]
  %s5 = inlined_call_operand.vmem [shape: f32[8,512], index: 5, kind: input, shape index: {}]
  %s6 = inlined_call_operand.vmem [shape: f32[256,16], index: 6, kind: input, shape index: {}]
  %s7 = inlined_call_operand.vmem [shape: f32[2,256], index: 7, kind: output, shape index: {0}]
  %s8 = inlined_call_operand.vmem [shape: f32[2,64], index: 8, kind: output, shape index: {1}]
  %s9 = inlined_call_operand.hbm [shape: f32[1,1], index: 9, kind: output, shape index: {2}]
  %s10 = inlined_call_operand.hbm [shape: f32[1,1], index: 10, kind: output, shape index: {3}]
  %11 = xla_tuple %s7, %s8, %s9, %s10
  %s12 = sld [smem:[#allocation0]]
  $region62: #{stvae_forward.1} parent=0
    _
  %s14 = ssub.s32 1, %s12
  %s15 = scalar_select 0, %s14, %s12
  $region1: #{stvae_forward.1} parent=0
    #allocation2 [shape = 'u8[512]{0}', space=smem, size = 0x200, scoped, tag = 'output window, operand 2, single buffered']
    #allocation3 [shape = 's32[1]{0}', space=sflag, size = 0x4, scoped, tag = 'scoped memory for stvae_forward.1']
    #allocation4 [shape = 'u8[512]{0}', space=smem, size = 0x200, scoped, tag = 'output window, operand 3, single buffered']
    #allocation5 [shape = 's32[1]{0}', space=sflag, size = 0x4, scoped, tag = 'scoped memory for stvae_forward.1']
    %16 = vsyncpa [#allocation3], 0
    %17 = vsyncpa [#allocation5], 0
    // Predicated region
    $region2: #{stvae_forward.1} parent=1 // pred_check
      _
    $region3: #{stvae_forward.1} parent=1 // pred_check_branch
      %19 = sbr.rel (0) target = $region5
    $region4: #{stvae_forward.1} parent=1 // pred_region
      _
    $region5: #{stvae_forward.1} parent=1 // pred_fallthru
      _
    // Predicated region
    $region6: #{stvae_forward.1} parent=1 // pred_check
      _
    $region7: #{stvae_forward.1} parent=1 // pred_check_branch
      %21 = sbr.rel (0) target = $region9
    $region8: #{stvae_forward.1} parent=1 // pred_region
      _
    $region9: #{stvae_forward.1} parent=1 // pred_fallthru
      _
    // Predicated region
    $region10: #{stvae_forward.1} parent=1 // pred_check
      _
    $region11: #{stvae_forward.1} parent=1 // pred_check_branch
      %23 = sbr.rel (0) target = $region13
    $region12: #{stvae_forward.1} parent=1 // pred_region
      _
    $region13: #{stvae_forward.1} parent=1 // pred_fallthru
      _
    // Predicated region
    $region14: #{stvae_forward.1} parent=1 // pred_check
      _
    $region15: #{stvae_forward.1} parent=1 // pred_check_branch
      %25 = sbr.rel (0) target = $region17
    $region16: #{stvae_forward.1} parent=1 // pred_region
      _
    $region17: #{stvae_forward.1} parent=1 // pred_fallthru
      _
    // Predicated region
    $region18: #{stvae_forward.1} parent=1 // pred_check
      _
    $region19: #{stvae_forward.1} parent=1 // pred_check_branch
      %27 = sbr.rel (0) target = $region21
    $region20: #{stvae_forward.1} parent=1 // pred_region
      _
    $region21: #{stvae_forward.1} parent=1 // pred_fallthru
      _
    // Predicated region
    $region22: #{stvae_forward.1} parent=1 // pred_check
      _
    $region23: #{stvae_forward.1} parent=1 // pred_check_branch
      %29 = sbr.rel (0) target = $region25
    $region24: #{stvae_forward.1} parent=1 // pred_region
      _
    $region25: #{stvae_forward.1} parent=1 // pred_fallthru
      _
    // Predicated region
    $region26: #{stvae_forward.1} parent=1 // pred_check
      _
    $region27: #{stvae_forward.1} parent=1 // pred_check_branch
      %31 = sbr.rel (0) target = $region29
    $region28: #{stvae_forward.1} parent=1 // pred_region
      _
    $region29: #{stvae_forward.1} parent=1 // pred_fallthru
      _
    %v32 = vld [vmem:[%s2] sm:$0xff]
    %v33 = vld [vmem:[%s2 + $0x8] sm:$0xff]
    %v34 = vld [vmem:[%s2 + $0x10] sm:$0xff]
    %v35 = vld [vmem:[%s2 + $0x18] sm:$0xff]
    %v36 = vld [vmem:[%s2 + $0x20] sm:$0xff]
    %v37 = vld [vmem:[%s2 + $0x28] sm:$0xff]
    %v38 = vld [vmem:[%s2 + $0x30] sm:$0xff]
    %v39 = vld [vmem:[%s2 + $0x38] sm:$0xff]
    %v40 = vld [vmem:[%s2 + $0x40] sm:$0xff]
    %v41 = vld [vmem:[%s2 + $0x48] sm:$0xff]
    %v42 = vld [vmem:[%s2 + $0x50] sm:$0xff]
    %v43 = vld [vmem:[%s2 + $0x58] sm:$0xff]
    %v44 = vld [vmem:[%s2 + $0x60] sm:$0xff]
    %v45 = vld [vmem:[%s2 + $0x68] sm:$0xff]
    %v46 = vld [vmem:[%s2 + $0x70] sm:$0xff]
    %v47 = vld [vmem:[%s2 + $0x78] sm:$0xff]
    %v48 = vld [vmem:[%s2 + $0x80] sm:$0xff]
    %v49 = vld [vmem:[%s2 + $0x88] sm:$0xff]
    %v50 = vld [vmem:[%s2 + $0x90] sm:$0xff]
    %v51 = vld [vmem:[%s2 + $0x98] sm:$0xff]
    %v52 = vld [vmem:[%s2 + $0xa0] sm:$0xff]
    %v53 = vld [vmem:[%s2 + $0xa8] sm:$0xff]
    %v54 = vld [vmem:[%s2 + $0xb0] sm:$0xff]
    %v55 = vld [vmem:[%s2 + $0xb8] sm:$0xff]
    %v56 = vld [vmem:[%s2 + $0xc0] sm:$0xff]
    %v57 = vld [vmem:[%s2 + $0xc8] sm:$0xff]
    %v58 = vld [vmem:[%s2 + $0xd0] sm:$0xff]
    %v59 = vld [vmem:[%s2 + $0xd8] sm:$0xff]
    %v60 = vld [vmem:[%s2 + $0xe0] sm:$0xff]
    %v61 = vld [vmem:[%s2 + $0xe8] sm:$0xff]
    %v62 = vld [vmem:[%s2 + $0xf0] sm:$0xff]
    %v63 = vld [vmem:[%s2 + $0xf8] sm:$0xff]
    %v64 = vld [vmem:[%s2 + $0x100] sm:$0xff]
    %v65 = vld [vmem:[%s2 + $0x108] sm:$0xff]
    %v66 = vld [vmem:[%s2 + $0x110] sm:$0xff]
    %v67 = vld [vmem:[%s2 + $0x118] sm:$0xff]
    %v68 = vld [vmem:[%s2 + $0x120] sm:$0xff]
    %v69 = vld [vmem:[%s2 + $0x128] sm:$0xff]
    %v70 = vld [vmem:[%s2 + $0x130] sm:$0xff]
    %v71 = vld [vmem:[%s2 + $0x138] sm:$0xff]
    %v72 = vld [vmem:[%s2 + $0x140] sm:$0xff]
    %v73 = vld [vmem:[%s2 + $0x148] sm:$0xff]
    %v74 = vld [vmem:[%s2 + $0x150] sm:$0xff]
    %v75 = vld [vmem:[%s2 + $0x158] sm:$0xff]
    %v76 = vld [vmem:[%s2 + $0x160] sm:$0xff]
    %v77 = vld [vmem:[%s2 + $0x168] sm:$0xff]
    %v78 = vld [vmem:[%s2 + $0x170] sm:$0xff]
    %v79 = vld [vmem:[%s2 + $0x178] sm:$0xff]
    %v80 = vld [vmem:[%s2 + $0x180] sm:$0xff]
    %v81 = vld [vmem:[%s2 + $0x188] sm:$0xff]
    %v82 = vld [vmem:[%s2 + $0x190] sm:$0xff]
    %v83 = vld [vmem:[%s2 + $0x198] sm:$0xff]
    %v84 = vld [vmem:[%s2 + $0x1a0] sm:$0xff]
    %v85 = vld [vmem:[%s2 + $0x1a8] sm:$0xff]
    %v86 = vld [vmem:[%s2 + $0x1b0] sm:$0xff]
    %v87 = vld [vmem:[%s2 + $0x1b8] sm:$0xff]
    %v88 = vld [vmem:[%s2 + $0x1c0] sm:$0xff]
    %v89 = vld [vmem:[%s2 + $0x1c8] sm:$0xff]
    %v90 = vld [vmem:[%s2 + $0x1d0] sm:$0xff]
    %v91 = vld [vmem:[%s2 + $0x1d8] sm:$0xff]
    %v92 = vld [vmem:[%s5] ss:$0 sm:$0xff]
    %v93 = vld [vmem:[%s5 + $0x1] ss:$0 sm:$0xff]
    %v94 = vld [vmem:[%s5 + $0x2] ss:$0 sm:$0xff]
    %v95 = vld [vmem:[%s5 + $0x3] ss:$0 sm:$0xff]
    %v96 = vld [vmem:[%s5 + $0x4] ss:$0 sm:$0xff]
    %s97 = scalar_lea.vmem %s5, 5
    %v98 = vld [vmem:[%s97] ss:$8 sm:$0x3]
    %s99 = scalar_lea.vmem %s5, 6
    %v100 = vld [vmem:[%s99] ss:$8 sm:$0xf]
    %v101 = vld [vmem:[%s5 + $0x7] ss:$0 sm:$0xff]
    %v102 = vld [vmem:[%s4] sm:$0xff]
    %v103 = vld [vmem:[%s4 + $0x8] sm:$0xff]
    %v104 = vld [vmem:[%s4 + $0x10] sm:$0xff]
    %v105 = vld [vmem:[%s4 + $0x18] sm:$0xff]
    %v106 = vld [vmem:[%s4 + $0x20] sm:$0xff]
    %v107 = vld [vmem:[%s4 + $0x28] sm:$0xff]
    %v108 = vld [vmem:[%s4 + $0x30] sm:$0xff]
    %v109 = vld [vmem:[%s4 + $0x38] sm:$0xff]
    %v110 = vld [vmem:[%s4 + $0x40] sm:$0xff]
    %v111 = vld [vmem:[%s4 + $0x48] sm:$0xff]
    %v112 = vld [vmem:[%s4 + $0x50] sm:$0xff]
    %v113 = vld [vmem:[%s4 + $0x58] sm:$0xff]
    %v114 = vld [vmem:[%s4 + $0x60] sm:$0xff]
    %v115 = vld [vmem:[%s4 + $0x68] sm:$0xff]
    %v116 = vld [vmem:[%s4 + $0x70] sm:$0xff]
    %v117 = vld [vmem:[%s4 + $0x78] sm:$0xff]
    %v118 = vld [vmem:[%s4 + $0x80] sm:$0xff]
    %v119 = vld [vmem:[%s4 + $0x88] sm:$0xff]
    %v120 = vld [vmem:[%s4 + $0xa0] sm:$0xff]
    %v121 = vld [vmem:[%s4 + $0xa8] sm:$0xff]
    %v122 = vld [vmem:[%s6] sm:$0xff]
    %v123 = vld [vmem:[%s6 + $0x8] sm:$0xff]
    %v124 = vld [vmem:[%s6 + $0x10] sm:$0xff]
    %v125 = vld [vmem:[%s6 + $0x18] sm:$0xff]
    %v126 = vld [vmem:[%s6 + $0x20] sm:$0xff]
    %v127 = vld [vmem:[%s6 + $0x28] sm:$0xff]
    %v128 = vld [vmem:[%s6 + $0x30] sm:$0xff]
    %v129 = vld [vmem:[%s6 + $0x38] sm:$0xff]
    %v130 = vld [vmem:[%s6 + $0x40] sm:$0xff]
    %v131 = vld [vmem:[%s6 + $0x48] sm:$0xff]
    %v132 = vld [vmem:[%s6 + $0x50] sm:$0xff]
    %v133 = vld [vmem:[%s6 + $0x58] sm:$0xff]
    %v134 = vld [vmem:[%s6 + $0x60] sm:$0xff]
    %v135 = vld [vmem:[%s6 + $0x68] sm:$0xff]
    %v136 = vld [vmem:[%s6 + $0x70] sm:$0xff]
    %v137 = vld [vmem:[%s6 + $0x78] sm:$0xff]
    %v138 = vld [vmem:[%s6 + $0x80] sm:$0xff]
    %v139 = vld [vmem:[%s6 + $0x88] sm:$0xff]
    %v140 = vld [vmem:[%s6 + $0x90] sm:$0xff]
    %v141 = vld [vmem:[%s6 + $0x98] sm:$0xff]
    %v142 = vld [vmem:[%s6 + $0xa0] sm:$0xff]
    %v143 = vld [vmem:[%s6 + $0xa8] sm:$0xff]
    %v144 = vld [vmem:[%s6 + $0xb0] sm:$0xff]
    %v145 = vld [vmem:[%s6 + $0xb8] sm:$0xff]
    %v146 = vld [vmem:[%s6 + $0xc0] sm:$0xff]
    %v147 = vld [vmem:[%s6 + $0xc8] sm:$0xff]
    %v148 = vld [vmem:[%s6 + $0xd0] sm:$0xff]
    %v149 = vld [vmem:[%s6 + $0xd8] sm:$0xff]
    %v150 = vld [vmem:[%s6 + $0xe0] sm:$0xff]
    %v151 = vld [vmem:[%s6 + $0xe8] sm:$0xff]
    %v152 = vld [vmem:[%s6 + $0xf0] sm:$0xff]
    %v153 = vld [vmem:[%s6 + $0xf8] sm:$0xff]
    %v154 = vld [vmem:[%s0] sm:$0xf]
    %v157 = vunpack.c.l.s4 1983009808
    %v158 = vunpack.c.0.s8 %v157
    %v159 = vlaneseq
    %v160 = vshrl.u32 %v159, 7
    %v161 = vsub.s32 %v158, %v160
    %v162 = vrot.slane %v154, %v161
    %v163 = vcombine.high %v162, %v162
    %166 = vmatprep.subr.mxu0 0.0
    %167 = vmatpush1.msra.mxu0 %v47
    %168 = vmatprep.subr.mxu0 0.0
    %169 = vmatpush1.msra.mxu0 %v46
    %170 = vmatprep.subr.mxu0 0.0
    %171 = vmatpush1.msra.mxu0 %v45
    %172 = vmatprep.subr.mxu0 0.0
    %173 = vmatpush1.msra.mxu0 %v44
    %174 = vmatprep.subr.mxu0 0.0
    %175 = vmatpush1.msra.mxu0 %v43
    %176 = vmatprep.subr.mxu0 0.0
    %177 = vmatpush1.msra.mxu0 %v42
    %178 = vmatprep.subr.mxu0 0.0
    %179 = vmatpush1.msra.mxu0 %v41
    %180 = vmatprep.subr.mxu0 0.0
    %181 = vmatpush1.msra.mxu0 %v40
    %182 = vmatprep.subr.mxu0 0.0
    %183 = vmatpush1.msra.mxu0 %v39
    %184 = vmatprep.subr.mxu0 0.0
    %185 = vmatpush1.msra.mxu0 %v38
    %186 = vmatprep.subr.mxu0 0.0
    %187 = vmatpush1.msra.mxu0 %v37
    %188 = vmatprep.subr.mxu0 0.0
    %189 = vmatpush1.msra.mxu0 %v36
    %190 = vmatprep.subr.mxu0 0.0
    %191 = vmatpush1.msra.mxu0 %v35
    %192 = vmatprep.subr.mxu0 0.0
    %193 = vmatpush1.msra.mxu0 %v34
    %194 = vmatprep.subr.mxu0 0.0
    %195 = vmatpush1.msra.mxu0 %v33
    %196 = vmatprep.subr.mxu0 0.0
    %197 = vmatpush1.msra.mxu0 %v32
    %198 = vmatprep.subr.mxu0 0.0
    %199 = vmatpush2.msra.mxu0 %v63
    %200 = vmatprep.subr.mxu0 0.0
    %201 = vmatpush2.msra.mxu0 %v62
    %202 = vmatprep.subr.mxu0 0.0
    %203 = vmatpush2.msra.mxu0 %v61
    %204 = vmatprep.subr.mxu0 0.0
    %205 = vmatpush2.msra.mxu0 %v60
    %206 = vmatprep.subr.mxu0 0.0
    %207 = vmatpush2.msra.mxu0 %v59
    %208 = vmatprep.subr.mxu0 0.0
    %209 = vmatpush2.msra.mxu0 %v58
    %210 = vmatprep.subr.mxu0 0.0
    %211 = vmatpush2.msra.mxu0 %v57
    %212 = vmatprep.subr.mxu0 0.0
    %213 = vmatpush2.msra.mxu0 %v56
    %214 = vmatprep.subr.mxu0 0.0
    %215 = vmatpush2.msra.mxu0 %v55
    %216 = vmatprep.subr.mxu0 0.0
    %217 = vmatpush2.msra.mxu0 %v54
    %218 = vmatprep.subr.mxu0 0.0
    %219 = vmatpush2.msra.mxu0 %v53
    %220 = vmatprep.subr.mxu0 0.0
    %221 = vmatpush2.msra.mxu0 %v52
    %222 = vmatprep.subr.mxu0 0.0
    %223 = vmatpush2.msra.mxu0 %v51
    %224 = vmatprep.subr.mxu0 0.0
    %225 = vmatpush2.msra.mxu0 %v50
    %226 = vmatprep.subr.mxu0 0.0
    %227 = vmatpush2.msra.mxu0 %v49
    %228 = vmatprep.subr.mxu0 0.0
    %229 = vmatpush2.msra.mxu0 %v48
    %230 = vmatprep.mubr.f32.mxu0 %v163
    %231 = vmatmul.mubr.f32.gmra.mxu0 %v162
    %v232 = vpop.f32.mrf.mxu0
    %v233 = vadd.f32 %v92, %v232
    %v234 = vpop.f32.mrf.mxu0
    %235 = vdwg.mxu0
    %v236 = vmax.f32 %v233, 0.0
    %vm237 = vcmask 523264
    %v239 = vsel %vm237, %v236, 0
    %241 = vmatprep.subr.mxu0 0.0
    %242 = vmatpush1.msra.mxu0 0.0
    %243 = vmatprep.subr.mxu0 0.0
    %244 = vmatpush1.msra.mxu0 0.0
    %245 = vmatprep.subr.mxu0 0.0
    %246 = vmatpush1.msra.mxu0 0.0
    %247 = vmatprep.subr.mxu0 0.0
    %248 = vmatpush1.msra.mxu0 0.0
    %249 = vmatprep.subr.mxu0 0.0
    %250 = vmatpush1.msra.mxu0 0.0
    %251 = vmatprep.subr.mxu0 0.0
    %252 = vmatpush1.msra.mxu0 0.0
    %253 = vmatprep.subr.mxu0 0.0
    %254 = vmatpush1.msra.mxu0 0.0
    %255 = vmatprep.subr.mxu0 0.0
    %256 = vmatpush1.msra.mxu0 0.0
    %257 = vmatprep.subr.mxu0 0.0
    %258 = vmatpush1.msra.mxu0 %v71
    %259 = vmatprep.subr.mxu0 0.0
    %260 = vmatpush1.msra.mxu0 %v70
    %261 = vmatprep.subr.mxu0 0.0
    %262 = vmatpush1.msra.mxu0 %v69
    %263 = vmatprep.subr.mxu0 0.0
    %264 = vmatpush1.msra.mxu0 %v68
    %265 = vmatprep.subr.mxu0 0.0
    %266 = vmatpush1.msra.mxu0 %v67
    %267 = vmatprep.subr.mxu0 0.0
    %268 = vmatpush1.msra.mxu0 %v66
    %269 = vmatprep.subr.mxu0 0.0
    %270 = vmatpush1.msra.mxu0 %v65
    %271 = vmatprep.subr.mxu0 0.0
    %272 = vmatpush1.msra.mxu0 %v64
    %273 = vmatprep.subr.mxu0 0.0
    %274 = vmatpush2.msra.mxu0 0.0
    %275 = vmatprep.subr.mxu0 0.0
    %276 = vmatpush2.msra.mxu0 0.0
    %277 = vmatprep.subr.mxu0 0.0
    %278 = vmatpush2.msra.mxu0 0.0
    %279 = vmatprep.subr.mxu0 0.0
    %280 = vmatpush2.msra.mxu0 0.0
    %281 = vmatprep.subr.mxu0 0.0
    %282 = vmatpush2.msra.mxu0 0.0
    %283 = vmatprep.subr.mxu0 0.0
    %284 = vmatpush2.msra.mxu0 0.0
    %285 = vmatprep.subr.mxu0 0.0
    %286 = vmatpush2.msra.mxu0 0.0
    %287 = vmatprep.subr.mxu0 0.0
    %288 = vmatpush2.msra.mxu0 0.0
    %289 = vmatprep.subr.mxu0 0.0
    %290 = vmatpush2.msra.mxu0 0.0
    %291 = vmatprep.subr.mxu0 0.0
    %292 = vmatpush2.msra.mxu0 0.0
    %293 = vmatprep.subr.mxu0 0.0
    %294 = vmatpush2.msra.mxu0 0.0
    %295 = vmatprep.subr.mxu0 0.0
    %296 = vmatpush2.msra.mxu0 0.0
    %297 = vmatprep.subr.mxu0 0.0
    %298 = vmatpush2.msra.mxu0 0.0
    %299 = vmatprep.subr.mxu0 0.0
    %300 = vmatpush2.msra.mxu0 0.0
    %301 = vmatprep.subr.mxu0 0.0
    %302 = vmatpush2.msra.mxu0 0.0
    %303 = vmatprep.subr.mxu0 0.0
    %304 = vmatpush2.msra.mxu0 0.0
    %305 = vmatprep.mubr.f32.mxu0 0.0
    %306 = vmatmul.mubr.f32.gmra.mxu0 %v239
    %v307 = vpop.f32.mrf.mxu0
    %v308 = vadd.f32 %v93, %v307
    %v309 = vpop.f32.mrf.mxu0
    %310 = vdwg.mxu0
    %v311 = vmax.f32 %v308, 0.0
    %v313 = vsel %vm237, %v311, 0
    %315 = vmatprep.subr.mxu0 0.0
    %316 = vmatpush1.msra.mxu0 0.0
    %317 = vmatprep.subr.mxu0 0.0
    %318 = vmatpush1.msra.mxu0 0.0
    %319 = vmatprep.subr.mxu0 0.0
    %320 = vmatpush1.msra.mxu0 0.0
    %321 = vmatprep.subr.mxu0 0.0
    %322 = vmatpush1.msra.mxu0 0.0
    %323 = vmatprep.subr.mxu0 0.0
    %324 = vmatpush1.msra.mxu0 0.0
    %325 = vmatprep.subr.mxu0 0.0
    %326 = vmatpush1.msra.mxu0 0.0
    %327 = vmatprep.subr.mxu0 0.0
    %328 = vmatpush1.msra.mxu0 0.0
    %329 = vmatprep.subr.mxu0 0.0
    %330 = vmatpush1.msra.mxu0 0.0
    %331 = vmatprep.subr.mxu0 0.0
    %332 = vmatpush1.msra.mxu0 %v79
    %333 = vmatprep.subr.mxu0 0.0
    %334 = vmatpush1.msra.mxu0 %v78
    %335 = vmatprep.subr.mxu0 0.0
    %336 = vmatpush1.msra.mxu0 %v77
    %337 = vmatprep.subr.mxu0 0.0
    %338 = vmatpush1.msra.mxu0 %v76
    %339 = vmatprep.subr.mxu0 0.0
    %340 = vmatpush1.msra.mxu0 %v75
    %341 = vmatprep.subr.mxu0 0.0
    %342 = vmatpush1.msra.mxu0 %v74
    %343 = vmatprep.subr.mxu0 0.0
    %344 = vmatpush1.msra.mxu0 %v73
    %345 = vmatprep.subr.mxu0 0.0
    %346 = vmatpush1.msra.mxu0 %v72
    %347 = vmatprep.subr.mxu0 0.0
    %348 = vmatpush2.msra.mxu0 0.0
    %349 = vmatprep.subr.mxu0 0.0
    %350 = vmatpush2.msra.mxu0 0.0
    %351 = vmatprep.subr.mxu0 0.0
    %352 = vmatpush2.msra.mxu0 0.0
    %353 = vmatprep.subr.mxu0 0.0
    %354 = vmatpush2.msra.mxu0 0.0
    %355 = vmatprep.subr.mxu0 0.0
    %356 = vmatpush2.msra.mxu0 0.0
    %357 = vmatprep.subr.mxu0 0.0
    %358 = vmatpush2.msra.mxu0 0.0
    %359 = vmatprep.subr.mxu0 0.0
    %360 = vmatpush2.msra.mxu0 0.0
    %361 = vmatprep.subr.mxu0 0.0
    %362 = vmatpush2.msra.mxu0 0.0
    %363 = vmatprep.subr.mxu0 0.0
    %364 = vmatpush2.msra.mxu0 0.0
    %365 = vmatprep.subr.mxu0 0.0
    %366 = vmatpush2.msra.mxu0 0.0
    %367 = vmatprep.subr.mxu0 0.0
    %368 = vmatpush2.msra.mxu0 0.0
    %369 = vmatprep.subr.mxu0 0.0
    %370 = vmatpush2.msra.mxu0 0.0
    %371 = vmatprep.subr.mxu0 0.0
    %372 = vmatpush2.msra.mxu0 0.0
    %373 = vmatprep.subr.mxu0 0.0
    %374 = vmatpush2.msra.mxu0 0.0
    %375 = vmatprep.subr.mxu0 0.0
    %376 = vmatpush2.msra.mxu0 0.0
    %377 = vmatprep.subr.mxu0 0.0
    %378 = vmatpush2.msra.mxu0 0.0
    %379 = vmatprep.mubr.f32.mxu0 0.0
    %380 = vmatmul.mubr.f32.gmra.mxu0 %v313
    %v381 = vpop.f32.mrf.mxu0
    %v382 = vadd.f32 %v94, %v381
    %v383 = vpop.f32.mrf.mxu0
    %384 = vdwg.mxu0
    %v385 = vmax.f32 %v382, %v101
    %vm386 = vcmask 517120
    %387 = vst.msk [vmem:[%s8] sm:$0x3] %vm386, %v385
    %v388 = vmul.f32 %v385, 0.5
    %v389 = vmul.f32 %v388, 1.442695
    %v390 = vpow.pop %v389
    %v391 = vld [vmem:[%s1] sm:$0x3]
    %393 = vrot.lane.b32.xlu0 %v391, 32
    %v394 = vpop.permute.xlu0 %393
    %v396 = vmul.f32 %v390, %v394
    %398 = vrot.lane.b32.xlu0 %v396, 96
    %v399 = vpop.permute.xlu0 %398
    %v401 = vadd.f32 %v385, %v399
    %v402 = vmul.f32 %v401, %v401
    %v403 = vmul.f32 %v402, 0.5
    %vm404 = vcmask 254976
    %v405 = vsel %vm404, %v403, 0.0
    %406 = vadd.xlane.f32.xlu0 %v405
    %v407 = vpop.xlane.xlu0 %406
    %v408 = vrot.slane %v407, 4
    %v409 = vadd.f32 %v407, %v408
    %v410 = vrot.slane %v409, 2
    %v411 = vadd.f32 %v409, %v410
    %v412 = vrot.slane %v411, 1
    %v413 = vadd.f32 %v411, %v412
    %s414 = vtos %v413
    %s415 = scalar_lea.smem [#allocation2], 0
    %416 = sst [smem:[%s415]] %s414
    %v417 = vsub.f32 %v401, %v385
    %v418 = vmul.f32 %v417, %v417
    %v419 = vmul.f32 %v390, %v390
    %421 = vrot.lane.b32.xlu0 %v419, 96
    %v422 = vpop.permute.xlu0 %421
    %v424 = vrcp.pop %v422
    %v425 = vmul.f32 %v418, %v424
    %427 = vrot.lane.b32.xlu0 %v385, 96
    %v428 = vpop.permute.xlu0 %427
    %v430 = vadd.f32 %v425, %v428
    %v431 = vmul.f32 %v430, 0.5
    %v432 = vsel %vm404, %v431, 0.0
    %433 = vadd.xlane.f32.xlu0 %v432
    %v434 = vpop.xlane.xlu0 %433
    %v435 = vrot.slane %v434, 4
    %v436 = vadd.f32 %v434, %v435
    %v437 = vrot.slane %v436, 2
    %v438 = vadd.f32 %v436, %v437
    %v439 = vrot.slane %v438, 1
    %v440 = vadd.f32 %v438, %v439
    %s441 = vtos %v440
    %s442 = ssub.f32 0.0, %s441
    %s443 = scalar_lea.smem [#allocation4], 0
    %444 = sst [smem:[%s443]] %s442
    %vm445 = vcmask 261120
    %v447 = vsel %vm445, %v401, 0
    %449 = vmatprep.subr.mxu0 0.0
    %450 = vmatpush1.msra.mxu0 0.0
    %451 = vmatprep.subr.mxu0 0.0
    %452 = vmatpush1.msra.mxu0 0.0
    %453 = vmatprep.subr.mxu0 0.0
    %454 = vmatpush1.msra.mxu0 0.0
    %455 = vmatprep.subr.mxu0 0.0
    %456 = vmatpush1.msra.mxu0 0.0
    %457 = vmatprep.subr.mxu0 0.0
    %458 = vmatpush1.msra.mxu0 0.0
    %459 = vmatprep.subr.mxu0 0.0
    %460 = vmatpush1.msra.mxu0 0.0
    %461 = vmatprep.subr.mxu0 0.0
    %462 = vmatpush1.msra.mxu0 0.0
    %463 = vmatprep.subr.mxu0 0.0
    %464 = vmatpush1.msra.mxu0 0.0
    %465 = vmatprep.subr.mxu0 0.0
    %466 = vmatpush1.msra.mxu0 0.0
    %467 = vmatprep.subr.mxu0 0.0
    %468 = vmatpush1.msra.mxu0 0.0
    %469 = vmatprep.subr.mxu0 0.0
    %470 = vmatpush1.msra.mxu0 0.0
    %471 = vmatprep.subr.mxu0 0.0
    %472 = vmatpush1.msra.mxu0 0.0
    %473 = vmatprep.subr.mxu0 0.0
    %474 = vmatpush1.msra.mxu0 %v83
    %475 = vmatprep.subr.mxu0 0.0
    %476 = vmatpush1.msra.mxu0 %v82
    %477 = vmatprep.subr.mxu0 0.0
    %478 = vmatpush1.msra.mxu0 %v81
    %479 = vmatprep.subr.mxu0 0.0
    %480 = vmatpush1.msra.mxu0 %v80
    %481 = vmatprep.subr.mxu0 0.0
    %482 = vmatpush2.msra.mxu0 0.0
    %483 = vmatprep.subr.mxu0 0.0
    %484 = vmatpush2.msra.mxu0 0.0
    %485 = vmatprep.subr.mxu0 0.0
    %486 = vmatpush2.msra.mxu0 0.0
    %487 = vmatprep.subr.mxu0 0.0
    %488 = vmatpush2.msra.mxu0 0.0
    %489 = vmatprep.subr.mxu0 0.0
    %490 = vmatpush2.msra.mxu0 0.0
    %491 = vmatprep.subr.mxu0 0.0
    %492 = vmatpush2.msra.mxu0 0.0
    %493 = vmatprep.subr.mxu0 0.0
    %494 = vmatpush2.msra.mxu0 0.0
    %495 = vmatprep.subr.mxu0 0.0
    %496 = vmatpush2.msra.mxu0 0.0
    %497 = vmatprep.subr.mxu0 0.0
    %498 = vmatpush2.msra.mxu0 0.0
    %499 = vmatprep.subr.mxu0 0.0
    %500 = vmatpush2.msra.mxu0 0.0
    %501 = vmatprep.subr.mxu0 0.0
    %502 = vmatpush2.msra.mxu0 0.0
    %503 = vmatprep.subr.mxu0 0.0
    %504 = vmatpush2.msra.mxu0 0.0
    %505 = vmatprep.subr.mxu0 0.0
    %506 = vmatpush2.msra.mxu0 0.0
    %507 = vmatprep.subr.mxu0 0.0
    %508 = vmatpush2.msra.mxu0 0.0
    %509 = vmatprep.subr.mxu0 0.0
    %510 = vmatpush2.msra.mxu0 0.0
    %511 = vmatprep.subr.mxu0 0.0
    %512 = vmatpush2.msra.mxu0 0.0
    %513 = vmatprep.mubr.f32.mxu0 0.0
    %514 = vmatmul.mubr.f32.gmra.mxu0 %v447
    %v515 = vpop.f32.mrf.mxu0
    %v516 = vadd.f32 %v95, %v515
    %v517 = vpop.f32.mrf.mxu0
    %518 = vdwg.mxu0
    %v519 = vmax.f32 %v516, 0.0
    %v521 = vsel %vm237, %v519, 0
    %523 = vmatprep.subr.mxu0 0.0
    %524 = vmatpush1.msra.mxu0 0.0
    %525 = vmatprep.subr.mxu0 0.0
    %526 = vmatpush1.msra.mxu0 0.0
    %527 = vmatprep.subr.mxu0 0.0
    %528 = vmatpush1.msra.mxu0 0.0
    %529 = vmatprep.subr.mxu0 0.0
    %530 = vmatpush1.msra.mxu0 0.0
    %531 = vmatprep.subr.mxu0 0.0
    %532 = vmatpush1.msra.mxu0 0.0
    %533 = vmatprep.subr.mxu0 0.0
    %534 = vmatpush1.msra.mxu0 0.0
    %535 = vmatprep.subr.mxu0 0.0
    %536 = vmatpush1.msra.mxu0 0.0
    %537 = vmatprep.subr.mxu0 0.0
    %538 = vmatpush1.msra.mxu0 0.0
    %539 = vmatprep.subr.mxu0 0.0
    %540 = vmatpush1.msra.mxu0 %v91
    %541 = vmatprep.subr.mxu0 0.0
    %542 = vmatpush1.msra.mxu0 %v90
    %543 = vmatprep.subr.mxu0 0.0
    %544 = vmatpush1.msra.mxu0 %v89
    %545 = vmatprep.subr.mxu0 0.0
    %546 = vmatpush1.msra.mxu0 %v88
    %547 = vmatprep.subr.mxu0 0.0
    %548 = vmatpush1.msra.mxu0 %v87
    %549 = vmatprep.subr.mxu0 0.0
    %550 = vmatpush1.msra.mxu0 %v86
    %551 = vmatprep.subr.mxu0 0.0
    %552 = vmatpush1.msra.mxu0 %v85
    %553 = vmatprep.subr.mxu0 0.0
    %554 = vmatpush1.msra.mxu0 %v84
    %555 = vmatprep.subr.mxu0 0.0
    %556 = vmatpush2.msra.mxu0 0.0
    %557 = vmatprep.subr.mxu0 0.0
    %558 = vmatpush2.msra.mxu0 0.0
    %559 = vmatprep.subr.mxu0 0.0
    %560 = vmatpush2.msra.mxu0 0.0
    %561 = vmatprep.subr.mxu0 0.0
    %562 = vmatpush2.msra.mxu0 0.0
    %563 = vmatprep.subr.mxu0 0.0
    %564 = vmatpush2.msra.mxu0 0.0
    %565 = vmatprep.subr.mxu0 0.0
    %566 = vmatpush2.msra.mxu0 0.0
    %567 = vmatprep.subr.mxu0 0.0
    %568 = vmatpush2.msra.mxu0 0.0
    %569 = vmatprep.subr.mxu0 0.0
    %570 = vmatpush2.msra.mxu0 0.0
    %571 = vmatprep.subr.mxu0 0.0
    %572 = vmatpush2.msra.mxu0 0.0
    %573 = vmatprep.subr.mxu0 0.0
    %574 = vmatpush2.msra.mxu0 0.0
    %575 = vmatprep.subr.mxu0 0.0
    %576 = vmatpush2.msra.mxu0 0.0
    %577 = vmatprep.subr.mxu0 0.0
    %578 = vmatpush2.msra.mxu0 0.0
    %579 = vmatprep.subr.mxu0 0.0
    %580 = vmatpush2.msra.mxu0 0.0
    %581 = vmatprep.subr.mxu0 0.0
    %582 = vmatpush2.msra.mxu0 0.0
    %583 = vmatprep.subr.mxu0 0.0
    %584 = vmatpush2.msra.mxu0 0.0
    %585 = vmatprep.subr.mxu0 0.0
    %586 = vmatpush2.msra.mxu0 0.0
    %587 = vmatprep.mubr.f32.mxu0 0.0
    %588 = vmatmul.mubr.f32.gmra.mxu0 %v521
    %v589 = vpop.f32.mrf.mxu0
    %v590 = vadd.f32 %v96, %v589
    %v591 = vpop.f32.mrf.mxu0
    %592 = vdwg.mxu0
    %v593 = vmax.f32 %v590, 0.0
    %v594 = vld [vmem:[%s3] sm:$0xff]
    %v595 = vld [vmem:[%s3 + $0x8] sm:$0xff]
    %v596 = vld [vmem:[%s3 + $0x10] sm:$0xff]
    %v597 = vld [vmem:[%s3 + $0x18] sm:$0xff]
    %v598 = vld [vmem:[%s3 + $0x20] sm:$0xff]
    %v599 = vld [vmem:[%s3 + $0x28] sm:$0xff]
    %v600 = vld [vmem:[%s3 + $0x30] sm:$0xff]
    %v601 = vld [vmem:[%s3 + $0x38] sm:$0xff]
    %v602 = vld [vmem:[%s3 + $0x40] sm:$0xff]
    %v603 = vld [vmem:[%s3 + $0x48] sm:$0xff]
    %v604 = vld [vmem:[%s3 + $0x50] sm:$0xff]
    %v605 = vld [vmem:[%s3 + $0x58] sm:$0xff]
    %v606 = vld [vmem:[%s3 + $0x60] sm:$0xff]
    %v607 = vld [vmem:[%s3 + $0x68] sm:$0xff]
    %v608 = vld [vmem:[%s3 + $0x70] sm:$0xff]
    %v609 = vld [vmem:[%s3 + $0x78] sm:$0xff]
    %v611 = vlaneseq
    %v612 = vshrl.u32 %v611, 7
    %v613 = vsub.s32 0, %v612
    %v614 = vrot.slane %v98, %v613
    %v615 = vlaneseq
    %v616 = vshrl.u32 %v615, 7
    %v617 = vsub.s32 1, %v616
    %v618 = vrot.slane %v98, %v617
    %v622 = vsel %vm237, %v593, 0
    %624 = vmatprep.subr.mxu0 0.0
    %625 = vmatpush1.msra.mxu0 0.0
    %626 = vmatprep.subr.mxu0 0.0
    %627 = vmatpush1.msra.mxu0 0.0
    %628 = vmatprep.subr.mxu0 0.0
    %629 = vmatpush1.msra.mxu0 0.0
    %630 = vmatprep.subr.mxu0 0.0
    %631 = vmatpush1.msra.mxu0 0.0
    %632 = vmatprep.subr.mxu0 0.0
    %633 = vmatpush1.msra.mxu0 0.0
    %634 = vmatprep.subr.mxu0 0.0
    %635 = vmatpush1.msra.mxu0 0.0
    %636 = vmatprep.subr.mxu0 0.0
    %637 = vmatpush1.msra.mxu0 0.0
    %638 = vmatprep.subr.mxu0 0.0
    %639 = vmatpush1.msra.mxu0 0.0
    %640 = vmatprep.subr.mxu0 %v609
    %641 = vmatpush1.msra.mxu0 %v608
    %642 = vmatprep.subr.mxu0 %v607
    %643 = vmatpush1.msra.mxu0 %v606
    %644 = vmatprep.subr.mxu0 %v605
    %645 = vmatpush1.msra.mxu0 %v604
    %646 = vmatprep.subr.mxu0 %v603
    %647 = vmatpush1.msra.mxu0 %v602
    %648 = vmatprep.subr.mxu0 %v601
    %649 = vmatpush1.msra.mxu0 %v600
    %650 = vmatprep.subr.mxu0 %v599
    %651 = vmatpush1.msra.mxu0 %v598
    %652 = vmatprep.subr.mxu0 %v597
    %653 = vmatpush1.msra.mxu0 %v596
    %654 = vmatprep.subr.mxu0 %v595
    %655 = vmatpush1.msra.mxu0 %v594
    %656 = vmatprep.subr.mxu0 0.0
    %657 = vmatpush2.msra.mxu0 0.0
    %658 = vmatprep.subr.mxu0 0.0
    %659 = vmatpush2.msra.mxu0 0.0
    %660 = vmatprep.subr.mxu0 0.0
    %661 = vmatpush2.msra.mxu0 0.0
    %662 = vmatprep.subr.mxu0 0.0
    %663 = vmatpush2.msra.mxu0 0.0
    %664 = vmatprep.subr.mxu0 0.0
    %665 = vmatpush2.msra.mxu0 0.0
    %666 = vmatprep.subr.mxu0 0.0
    %667 = vmatpush2.msra.mxu0 0.0
    %668 = vmatprep.subr.mxu0 0.0
    %669 = vmatpush2.msra.mxu0 0.0
    %670 = vmatprep.subr.mxu0 0.0
    %671 = vmatpush2.msra.mxu0 0.0
    %672 = vmatprep.subr.mxu0 0.0
    %673 = vmatpush2.msra.mxu0 0.0
    %674 = vmatprep.subr.mxu0 0.0
    %675 = vmatpush2.msra.mxu0 0.0
    %676 = vmatprep.subr.mxu0 0.0
    %677 = vmatpush2.msra.mxu0 0.0
    %678 = vmatprep.subr.mxu0 0.0
    %679 = vmatpush2.msra.mxu0 0.0
    %680 = vmatprep.subr.mxu0 0.0
    %681 = vmatpush2.msra.mxu0 0.0
    %682 = vmatprep.subr.mxu0 0.0
    %683 = vmatpush2.msra.mxu0 0.0
    %684 = vmatprep.subr.mxu0 0.0
    %685 = vmatpush2.msra.mxu0 0.0
    %686 = vmatprep.subr.mxu0 0.0
    %687 = vmatpush2.msra.mxu0 0.0
    %688 = vmatprep.mubr.f32.mxu0 0.0
    %689 = vmatmul.mubr.f32.gmra.mxu0 %v622
    %v690 = vpop.f32.mrf.mxu0
    %v691 = vadd.f32 %v614, %v690
    %v692 = vpop.f32.mrf.mxu0
    %v693 = vadd.f32 %v618, %v692
    %694 = vdwg.mxu0
    %v695 = vxor.u32 %v691, 2147483648
    %v696 = vxor.u32 %v693, 2147483648
    %v697 = vmul.f32 %v695, 1.442695
    %v698 = vpow.pop %v697
    %v699 = vmul.f32 %v696, 1.442695
    %v700 = vpow.pop %v699
    %v701 = vadd.f32 %v698, 1.0
    %v702 = vadd.f32 %v700, 1.0
    %v703 = vrcp.pop %v701
    %v704 = vmul.f32 1.0, %v703
    %v705 = vrcp.pop %v702
    %v706 = vmul.f32 1.0, %v705
    %v707 = vmax.f32 %v704, 1e-06
    %v708 = vmax.f32 %v706, 1e-06
    %v709 = vmin.f32 %v707, 0.999999
    %v710 = vmin.f32 %v708, 0.999999
    %v712 = vlaneseq
    %v713 = vshrl.u32 %v712, 7
    %v714 = vsub.s32 0, %v713
    %v715 = vrot.slane %v100, %v714
    %v716 = vlaneseq
    %v717 = vshrl.u32 %v716, 7
    %v718 = vsub.s32 1, %v717
    %v719 = vrot.slane %v100, %v718
    %v720 = vlaneseq
    %v721 = vshrl.u32 %v720, 7
    %v722 = vsub.s32 2, %v721
    %v723 = vrot.slane %v100, %v722
    %v724 = vlaneseq
    %v725 = vshrl.u32 %v724, 7
    %v726 = vsub.s32 3, %v725
    %v727 = vrot.slane %v100, %v726
    %732 = vmatprep.subr.mxu0 0.0
    %733 = vmatpush1.msra.mxu0 0.0
    %734 = vmatprep.subr.mxu0 0.0
    %735 = vmatpush1.msra.mxu0 0.0
    %736 = vmatprep.subr.mxu0 0.0
    %737 = vmatpush1.msra.mxu0 0.0
    %738 = vmatprep.subr.mxu0 0.0
    %739 = vmatpush1.msra.mxu0 0.0
    %740 = vmatprep.subr.mxu0 0.0
    %741 = vmatpush1.msra.mxu0 0.0
    %742 = vmatprep.subr.mxu0 0.0
    %743 = vmatpush1.msra.mxu0 0.0
    %744 = vmatprep.subr.mxu0 0.0
    %745 = vmatpush1.msra.mxu0 0.0
    %746 = vmatprep.subr.mxu0 0.0
    %747 = vmatpush1.msra.mxu0 0.0
    %748 = vmatprep.subr.mxu0 0.0
    %749 = vmatpush1.msra.mxu0 0.0
    %750 = vmatprep.subr.mxu0 0.0
    %751 = vmatpush1.msra.mxu0 0.0
    %752 = vmatprep.subr.mxu0 0.0
    %753 = vmatpush1.msra.mxu0 0.0
    %754 = vmatprep.subr.mxu0 0.0
    %755 = vmatpush1.msra.mxu0 0.0
    %756 = vmatprep.subr.mxu0 %v115
    %757 = vmatpush1.msra.mxu0 %v114
    %758 = vmatprep.subr.mxu0 %v111
    %759 = vmatpush1.msra.mxu0 %v110
    %760 = vmatprep.subr.mxu0 %v107
    %761 = vmatpush1.msra.mxu0 %v106
    %762 = vmatprep.subr.mxu0 %v103
    %763 = vmatpush1.msra.mxu0 %v102
    %764 = vmatprep.subr.mxu0 0.0
    %765 = vmatpush2.msra.mxu0 0.0
    %766 = vmatprep.subr.mxu0 0.0
    %767 = vmatpush2.msra.mxu0 0.0
    %768 = vmatprep.subr.mxu0 0.0
    %769 = vmatpush2.msra.mxu0 0.0
    %770 = vmatprep.subr.mxu0 0.0
    %771 = vmatpush2.msra.mxu0 0.0
    %772 = vmatprep.subr.mxu0 0.0
    %773 = vmatpush2.msra.mxu0 0.0
    %774 = vmatprep.subr.mxu0 0.0
    %775 = vmatpush2.msra.mxu0 0.0
    %776 = vmatprep.subr.mxu0 0.0
    %777 = vmatpush2.msra.mxu0 0.0
    %778 = vmatprep.subr.mxu0 0.0
    %779 = vmatpush2.msra.mxu0 0.0
    %780 = vmatprep.subr.mxu0 0.0
    %781 = vmatpush2.msra.mxu0 0.0
    %782 = vmatprep.subr.mxu0 0.0
    %783 = vmatpush2.msra.mxu0 0.0
    %784 = vmatprep.subr.mxu0 0.0
    %785 = vmatpush2.msra.mxu0 0.0
    %786 = vmatprep.subr.mxu0 0.0
    %787 = vmatpush2.msra.mxu0 0.0
    %788 = vmatprep.subr.mxu0 0.0
    %789 = vmatpush2.msra.mxu0 0.0
    %790 = vmatprep.subr.mxu0 0.0
    %791 = vmatpush2.msra.mxu0 0.0
    %792 = vmatprep.subr.mxu0 0.0
    %793 = vmatpush2.msra.mxu0 0.0
    %794 = vmatprep.subr.mxu0 0.0
    %795 = vmatpush2.msra.mxu0 0.0
    %796 = vmatprep.mubr.f32.mxu0 0.0
    %797 = vmatmul.mubr.f32.gmra.mxu0 %v447
    %v798 = vpop.f32.mrf.mxu0
    %v799 = vadd.f32 %v715, %v798
    %v800 = vpop.f32.mrf.mxu0
    %v801 = vadd.f32 %v719, %v800
    %802 = vdwg.mxu0
    %803 = vmatprep.subr.mxu0 0.0
    %804 = vmatpush1.msra.mxu0 0.0
    %805 = vmatprep.subr.mxu0 0.0
    %806 = vmatpush1.msra.mxu0 0.0
    %807 = vmatprep.subr.mxu0 0.0
    %808 = vmatpush1.msra.mxu0 0.0
    %809 = vmatprep.subr.mxu0 0.0
    %810 = vmatpush1.msra.mxu0 0.0
    %811 = vmatprep.subr.mxu0 0.0
    %812 = vmatpush1.msra.mxu0 0.0
    %813 = vmatprep.subr.mxu0 0.0
    %814 = vmatpush1.msra.mxu0 0.0
    %815 = vmatprep.subr.mxu0 0.0
    %816 = vmatpush1.msra.mxu0 0.0
    %817 = vmatprep.subr.mxu0 0.0
    %818 = vmatpush1.msra.mxu0 0.0
    %819 = vmatprep.subr.mxu0 0.0
    %820 = vmatpush1.msra.mxu0 0.0
    %821 = vmatprep.subr.mxu0 0.0
    %822 = vmatpush1.msra.mxu0 0.0
    %823 = vmatprep.subr.mxu0 0.0
    %824 = vmatpush1.msra.mxu0 0.0
    %825 = vmatprep.subr.mxu0 0.0
    %826 = vmatpush1.msra.mxu0 0.0
    %827 = vmatprep.subr.mxu0 %v117
    %828 = vmatpush1.msra.mxu0 %v116
    %829 = vmatprep.subr.mxu0 %v113
    %830 = vmatpush1.msra.mxu0 %v112
    %831 = vmatprep.subr.mxu0 %v109
    %832 = vmatpush1.msra.mxu0 %v108
    %833 = vmatprep.subr.mxu0 %v105
    %834 = vmatpush1.msra.mxu0 %v104
    %835 = vmatprep.subr.mxu0 0.0
    %836 = vmatpush2.msra.mxu0 0.0
    %837 = vmatprep.subr.mxu0 0.0
    %838 = vmatpush2.msra.mxu0 0.0
    %839 = vmatprep.subr.mxu0 0.0
    %840 = vmatpush2.msra.mxu0 0.0
    %841 = vmatprep.subr.mxu0 0.0
    %842 = vmatpush2.msra.mxu0 0.0
    %843 = vmatprep.subr.mxu0 0.0
    %844 = vmatpush2.msra.mxu0 0.0
    %845 = vmatprep.subr.mxu0 0.0
    %846 = vmatpush2.msra.mxu0 0.0
    %847 = vmatprep.subr.mxu0 0.0
    %848 = vmatpush2.msra.mxu0 0.0
    %849 = vmatprep.subr.mxu0 0.0
    %850 = vmatpush2.msra.mxu0 0.0
    %851 = vmatprep.subr.mxu0 0.0
    %852 = vmatpush2.msra.mxu0 0.0
    %853 = vmatprep.subr.mxu0 0.0
    %854 = vmatpush2.msra.mxu0 0.0
    %855 = vmatprep.subr.mxu0 0.0
    %856 = vmatpush2.msra.mxu0 0.0
    %857 = vmatprep.subr.mxu0 0.0
    %858 = vmatpush2.msra.mxu0 0.0
    %859 = vmatprep.subr.mxu0 0.0
    %860 = vmatpush2.msra.mxu0 0.0
    %861 = vmatprep.subr.mxu0 0.0
    %862 = vmatpush2.msra.mxu0 0.0
    %863 = vmatprep.subr.mxu0 0.0
    %864 = vmatpush2.msra.mxu0 0.0
    %865 = vmatprep.subr.mxu0 0.0
    %866 = vmatpush2.msra.mxu0 0.0
    %867 = vmatprep.mubr.f32.mxu0 0.0
    %868 = vmatmul.mubr.f32.gmra.mxu0 %v447
    %v869 = vpop.f32.mrf.mxu0
    %v870 = vadd.f32 %v723, %v869
    %v871 = vpop.f32.mrf.mxu0
    %v872 = vadd.f32 %v727, %v871
    %873 = vdwg.mxu0
    %v874 = vadd.f32 %v799, 1.0
    %v875 = vadd.f32 %v801, 1.0
    %v876 = vmul.f32 %v874, 7.5
    %v877 = vmul.f32 %v875, 7.5
    %v878 = vmax.f32 %v876, 0.0
    %v879 = vmax.f32 %v877, 0.0
    %v880 = vmin.f32 %v878, 15.0
    %v881 = vmin.f32 %v879, 15.0
    %v882 = vadd.f32 %v870, 1.0
    %v883 = vadd.f32 %v872, 1.0
    %v884 = vmul.f32 %v882, 7.5
    %v885 = vmul.f32 %v883, 7.5
    %v886 = vmax.f32 %v884, 0.0
    %v887 = vmax.f32 %v885, 0.0
    %v888 = vmin.f32 %v886, 15.0
    %v889 = vmin.f32 %v887, 15.0
    %v890 = vlaneseq
    %v891 = vshrl.u32 %v890, 7
    %v892 = vadd.s32 %v891, 8
    %v893 = vcvt.s32.f32 %v891
    %v894 = vcvt.s32.f32 %v892
    %v895 = vlaneseq
    %v896 = vshrl.u32 %v895, 7
    %v897 = vsub.s32 0, %v896
    %v898 = vrot.slane %v888, %v897
    %v899 = vlaneseq
    %v900 = vshrl.u32 %v899, 7
    %v901 = vsub.s32 0, %v900
    %v902 = vrot.slane %v889, %v901
    %v903 = vsub.f32 %v893, %v898
    %v904 = vsub.f32 %v893, %v902
    %v905 = vsub.f32 %v894, %v898
    %v906 = vsub.f32 %v894, %v902
    %v907 = vand.u32 2147483647, %v903
    %v908 = vand.u32 2147483647, %v904
    %v909 = vand.u32 2147483647, %v905
    %v910 = vand.u32 2147483647, %v906
    %v911 = vsub.f32 1.0, %v907
    %v912 = vsub.f32 1.0, %v908
    %v913 = vsub.f32 1.0, %v909
    %v914 = vsub.f32 1.0, %v910
    %v915 = vmax.f32 %v911, 0.0
    %v916 = vmax.f32 %v912, 0.0
    %v917 = vmax.f32 %v913, 0.0
    %v918 = vmax.f32 %v914, 0.0
    %v919 = vlaneseq
    %v920 = vshrl.u32 %v919, 7
    %v921 = vsub.s32 0, %v920
    %v922 = vrot.slane %v880, %v921
    %v923 = vlaneseq
    %v924 = vshrl.u32 %v923, 7
    %v925 = vsub.s32 0, %v924
    %v926 = vrot.slane %v881, %v925
    %v927 = vsub.f32 %v893, %v922
    %v928 = vsub.f32 %v893, %v926
    %v929 = vsub.f32 %v894, %v922
    %v930 = vsub.f32 %v894, %v926
    %v931 = vand.u32 2147483647, %v927
    %v932 = vand.u32 2147483647, %v928
    %v933 = vand.u32 2147483647, %v929
    %v934 = vand.u32 2147483647, %v930
    %v935 = vsub.f32 1.0, %v931
    %v936 = vsub.f32 1.0, %v932
    %v937 = vsub.f32 1.0, %v933
    %v938 = vsub.f32 1.0, %v934
    %v939 = vmax.f32 %v935, 0.0
    %v940 = vmax.f32 %v936, 0.0
    %v941 = vmax.f32 %v937, 0.0
    %v942 = vmax.f32 %v938, 0.0
    %v943 = vlaneseq
    %v944 = vshrl.u32 %v943, 7
    %v945 = vsub.s32 0, %v944
    %v946 = vrot.slane %v709, %v945
    %v947 = vlaneseq
    %v948 = vshrl.u32 %v947, 7
    %v949 = vsub.s32 0, %v948
    %v950 = vrot.slane %v710, %v949
    %v951 = vmul.f32 %v118, %v946
    %v952 = vmul.f32 %v119, %v950
    %v953 = vmul.f32 %v120, %v946
    %v954 = vmul.f32 %v121, %v950
    %955 = vmatprep.subr.mxu0 0.0
    %956 = vmatpush1.msra.mxu0 %v137
    %957 = vmatprep.subr.mxu0 0.0
    %958 = vmatpush1.msra.mxu0 %v136
    %959 = vmatprep.subr.mxu0 0.0
    %960 = vmatpush1.msra.mxu0 %v135
    %961 = vmatprep.subr.mxu0 0.0
    %962 = vmatpush1.msra.mxu0 %v134
    %963 = vmatprep.subr.mxu0 0.0
    %964 = vmatpush1.msra.mxu0 %v133
    %965 = vmatprep.subr.mxu0 0.0
    %966 = vmatpush1.msra.mxu0 %v132
    %967 = vmatprep.subr.mxu0 0.0
    %968 = vmatpush1.msra.mxu0 %v131
    %969 = vmatprep.subr.mxu0 0.0
    %970 = vmatpush1.msra.mxu0 %v130
    %971 = vmatprep.subr.mxu0 0.0
    %972 = vmatpush1.msra.mxu0 %v129
    %973 = vmatprep.subr.mxu0 0.0
    %974 = vmatpush1.msra.mxu0 %v128
    %975 = vmatprep.subr.mxu0 0.0
    %976 = vmatpush1.msra.mxu0 %v127
    %977 = vmatprep.subr.mxu0 0.0
    %978 = vmatpush1.msra.mxu0 %v126
    %979 = vmatprep.subr.mxu0 0.0
    %980 = vmatpush1.msra.mxu0 %v125
    %981 = vmatprep.subr.mxu0 0.0
    %982 = vmatpush1.msra.mxu0 %v124
    %983 = vmatprep.subr.mxu0 0.0
    %984 = vmatpush1.msra.mxu0 %v123
    %985 = vmatprep.subr.mxu0 0.0
    %986 = vmatpush1.msra.mxu0 %v122
    %987 = vmatprep.subr.mxu0 0.0
    %988 = vmatpush2.msra.mxu0 %v153
    %989 = vmatprep.subr.mxu0 0.0
    %990 = vmatpush2.msra.mxu0 %v152
    %991 = vmatprep.subr.mxu0 0.0
    %992 = vmatpush2.msra.mxu0 %v151
    %993 = vmatprep.subr.mxu0 0.0
    %994 = vmatpush2.msra.mxu0 %v150
    %995 = vmatprep.subr.mxu0 0.0
    %996 = vmatpush2.msra.mxu0 %v149
    %997 = vmatprep.subr.mxu0 0.0
    %998 = vmatpush2.msra.mxu0 %v148
    %999 = vmatprep.subr.mxu0 0.0
    %1000 = vmatpush2.msra.mxu0 %v147
    %1001 = vmatprep.subr.mxu0 0.0
    %1002 = vmatpush2.msra.mxu0 %v146
    %1003 = vmatprep.subr.mxu0 0.0
    %1004 = vmatpush2.msra.mxu0 %v145
    %1005 = vmatprep.subr.mxu0 0.0
    %1006 = vmatpush2.msra.mxu0 %v144
    %1007 = vmatprep.subr.mxu0 0.0
    %1008 = vmatpush2.msra.mxu0 %v143
    %1009 = vmatprep.subr.mxu0 0.0
    %1010 = vmatpush2.msra.mxu0 %v142
    %1011 = vmatprep.subr.mxu0 0.0
    %1012 = vmatpush2.msra.mxu0 %v141
    %1013 = vmatprep.subr.mxu0 0.0
    %1014 = vmatpush2.msra.mxu0 %v140
    %1015 = vmatprep.subr.mxu0 0.0
    %1016 = vmatpush2.msra.mxu0 %v139
    %1017 = vmatprep.subr.mxu0 0.0
    %1018 = vmatpush2.msra.mxu0 %v138
    %1019 = vmatprep.mubr.f32.mxu0 %v952
    %1020 = vmatmul.mubr.f32.gmra.mxu0 %v951
    %v1021 = vpop.f32.mrf.mxu0
    %v1022 = vadd.f32 0.0, %v1021
    %v1023 = vpop.f32.mrf.mxu0
    %1024 = vmatprep.mubr.f32.mxu0 %v954
    %1025 = vmatmul.mubr.f32.gmra.mxu0 %v953
    %v1026 = vpop.f32.mrf.mxu0
    %v1027 = vadd.f32 0.0, %v1026
    %v1028 = vpop.f32.mrf.mxu0
    %1029 = vdwg.mxu0
    %vm1030 = vcmask 130048
    %v1032 = vsel %vm1030, %v1022, 0
    %v1035 = vsel %vm1030, %v1027, 0
    %1037 = vmatprep.subr.mxu0 0.0
    %1038 = vmatpush1.msra.mxu0 0.0
    %1039 = vmatprep.subr.mxu0 0.0
    %1040 = vmatpush1.msra.mxu0 0.0
    %1041 = vmatprep.subr.mxu0 0.0
    %1042 = vmatpush1.msra.mxu0 0.0
    %1043 = vmatprep.subr.mxu0 0.0
    %1044 = vmatpush1.msra.mxu0 0.0
    %1045 = vmatprep.subr.mxu0 0.0
    %1046 = vmatpush1.msra.mxu0 0.0
    %1047 = vmatprep.subr.mxu0 0.0
    %1048 = vmatpush1.msra.mxu0 0.0
    %1049 = vmatprep.subr.mxu0 0.0
    %1050 = vmatpush1.msra.mxu0 0.0
    %1051 = vmatprep.subr.mxu0 0.0
    %1052 = vmatpush1.msra.mxu0 0.0
    %1053 = vmatprep.subr.mxu0 0.0
    %1054 = vmatpush1.msra.mxu0 0.0
    %1055 = vmatprep.subr.mxu0 0.0
    %1056 = vmatpush1.msra.mxu0 0.0
    %1057 = vmatprep.subr.mxu0 0.0
    %1058 = vmatpush1.msra.mxu0 0.0
    %1059 = vmatprep.subr.mxu0 0.0
    %1060 = vmatpush1.msra.mxu0 0.0
    %1061 = vmatprep.subr.mxu0 0.0
    %1062 = vmatpush1.msra.mxu0 0.0
    %1063 = vmatprep.subr.mxu0 0.0
    %1064 = vmatpush1.msra.mxu0 0.0
    %1065 = vmatprep.subr.mxu0 %v918
    %1066 = vmatpush1.msra.mxu0 %v917
    %1067 = vmatprep.subr.mxu0 %v916
    %1068 = vmatpush1.msra.mxu0 %v915
    %1069 = vmatprep.subr.mxu0 0.0
    %1070 = vmatpush2.msra.mxu0 0.0
    %1071 = vmatprep.subr.mxu0 0.0
    %1072 = vmatpush2.msra.mxu0 0.0
    %1073 = vmatprep.subr.mxu0 0.0
    %1074 = vmatpush2.msra.mxu0 0.0
    %1075 = vmatprep.subr.mxu0 0.0
    %1076 = vmatpush2.msra.mxu0 0.0
    %1077 = vmatprep.subr.mxu0 0.0
    %1078 = vmatpush2.msra.mxu0 0.0
    %1079 = vmatprep.subr.mxu0 0.0
    %1080 = vmatpush2.msra.mxu0 0.0
    %1081 = vmatprep.subr.mxu0 0.0
    %1082 = vmatpush2.msra.mxu0 0.0
    %1083 = vmatprep.subr.mxu0 0.0
    %1084 = vmatpush2.msra.mxu0 0.0
    %1085 = vmatprep.subr.mxu0 0.0
    %1086 = vmatpush2.msra.mxu0 0.0
    %1087 = vmatprep.subr.mxu0 0.0
    %1088 = vmatpush2.msra.mxu0 0.0
    %1089 = vmatprep.subr.mxu0 0.0
    %1090 = vmatpush2.msra.mxu0 0.0
    %1091 = vmatprep.subr.mxu0 0.0
    %1092 = vmatpush2.msra.mxu0 0.0
    %1093 = vmatprep.subr.mxu0 0.0
    %1094 = vmatpush2.msra.mxu0 0.0
    %1095 = vmatprep.subr.mxu0 0.0
    %1096 = vmatpush2.msra.mxu0 0.0
    %1097 = vmatprep.subr.mxu0 0.0
    %1098 = vmatpush2.msra.mxu0 0.0
    %1099 = vmatprep.subr.mxu0 0.0
    %1100 = vmatpush2.msra.mxu0 0.0
    %1101 = vmatprep.mubr.f32.mxu0 0.0
    %1102 = vmatmul.mubr.f32.gmra.mxu0 %v1032
    %v1103 = vpop.f32.mrf.mxu0
    %v1104 = vadd.f32 0.0, %v1103
    %v1105 = vpop.f32.mrf.mxu0
    %v1106 = vadd.f32 0.0, %v1105
    %1107 = vmatprep.mubr.f32.mxu0 0.0
    %1108 = vmatmul.mubr.f32.gmra.mxu0 %v1035
    %v1109 = vpop.f32.mrf.mxu0
    %v1110 = vadd.f32 0.0, %v1109
    %v1111 = vpop.f32.mrf.mxu0
    %v1112 = vadd.f32 0.0, %v1111
    %1113 = vdwg.mxu0
    %v1114 = vmul.f32 %v939, %v1104
    %v1115 = vmul.f32 %v940, %v1106
    %v1116 = vmul.f32 %v941, %v1110
    %v1117 = vmul.f32 %v942, %v1112
    %v1118 = vadd.f32 %v1114, %v1116
    %v1119 = vrot.slane %v1118, 4
    %v1120 = vadd.f32 %v1118, %v1119
    %v1121 = vrot.slane %v1120, 2
    %v1122 = vadd.f32 %v1120, %v1121
    %v1123 = vrot.slane %v1122, 1
    %v1124 = vadd.f32 %v1122, %v1123
    %v1125 = vadd.f32 %v1115, %v1117
    %v1126 = vrot.slane %v1125, 4
    %v1127 = vadd.f32 %v1125, %v1126
    %v1128 = vrot.slane %v1127, 2
    %v1129 = vadd.f32 %v1127, %v1128
    %v1130 = vrot.slane %v1129, 1
    %v1131 = vadd.f32 %v1129, %v1130
    %v1132 = vmax.f32 %v1124, 1e-06
    %v1133 = vmax.f32 %v1131, 1e-06
    %v1134 = vmin.f32 %v1132, 0.999999
    %v1135 = vmin.f32 %v1133, 0.999999
    %v1136 = vlaneseq
    %v1137 = vshrl.u32 %v1136, 7
    %v1138 = vsub.s32 1, %v1137
    %v1139 = vrot.slane %v888, %v1138
    %v1140 = vlaneseq
    %v1141 = vshrl.u32 %v1140, 7
    %v1142 = vsub.s32 1, %v1141
    %v1143 = vrot.slane %v889, %v1142
    %v1144 = vsub.f32 %v893, %v1139
    %v1145 = vsub.f32 %v893, %v1143
    %v1146 = vsub.f32 %v894, %v1139
    %v1147 = vsub.f32 %v894, %v1143
    %v1148 = vand.u32 2147483647, %v1144
    %v1149 = vand.u32 2147483647, %v1145
    %v1150 = vand.u32 2147483647, %v1146
    %v1151 = vand.u32 2147483647, %v1147
    %v1152 = vsub.f32 1.0, %v1148
    %v1153 = vsub.f32 1.0, %v1149
    %v1154 = vsub.f32 1.0, %v1150
    %v1155 = vsub.f32 1.0, %v1151
    %v1156 = vmax.f32 %v1152, 0.0
    %v1157 = vmax.f32 %v1153, 0.0
    %v1158 = vmax.f32 %v1154, 0.0
    %v1159 = vmax.f32 %v1155, 0.0
    %v1160 = vlaneseq
    %v1161 = vshrl.u32 %v1160, 7
    %v1162 = vsub.s32 1, %v1161
    %v1163 = vrot.slane %v880, %v1162
    %v1164 = vlaneseq
    %v1165 = vshrl.u32 %v1164, 7
    %v1166 = vsub.s32 1, %v1165
    %v1167 = vrot.slane %v881, %v1166
    %v1168 = vsub.f32 %v893, %v1163
    %v1169 = vsub.f32 %v893, %v1167
    %v1170 = vsub.f32 %v894, %v1163
    %v1171 = vsub.f32 %v894, %v1167
    %v1172 = vand.u32 2147483647, %v1168
    %v1173 = vand.u32 2147483647, %v1169
    %v1174 = vand.u32 2147483647, %v1170
    %v1175 = vand.u32 2147483647, %v1171
    %v1176 = vsub.f32 1.0, %v1172
    %v1177 = vsub.f32 1.0, %v1173
    %v1178 = vsub.f32 1.0, %v1174
    %v1179 = vsub.f32 1.0, %v1175
    %v1180 = vmax.f32 %v1176, 0.0
    %v1181 = vmax.f32 %v1177, 0.0
    %v1182 = vmax.f32 %v1178, 0.0
    %v1183 = vmax.f32 %v1179, 0.0
    %v1184 = vlaneseq
    %v1185 = vshrl.u32 %v1184, 7
    %v1186 = vsub.s32 1, %v1185
    %v1187 = vrot.slane %v709, %v1186
    %v1188 = vlaneseq
    %v1189 = vshrl.u32 %v1188, 7
    %v1190 = vsub.s32 1, %v1189
    %v1191 = vrot.slane %v710, %v1190
    %v1192 = vmul.f32 %v118, %v1187
    %v1193 = vmul.f32 %v119, %v1191
    %v1194 = vmul.f32 %v120, %v1187
    %v1195 = vmul.f32 %v121, %v1191
    %1196 = vmatprep.subr.mxu0 0.0
    %1197 = vmatpush1.msra.mxu0 %v137
    %1198 = vmatprep.subr.mxu0 0.0
    %1199 = vmatpush1.msra.mxu0 %v136
    %1200 = vmatprep.subr.mxu0 0.0
    %1201 = vmatpush1.msra.mxu0 %v135
    %1202 = vmatprep.subr.mxu0 0.0
    %1203 = vmatpush1.msra.mxu0 %v134
    %1204 = vmatprep.subr.mxu0 0.0
    %1205 = vmatpush1.msra.mxu0 %v133
    %1206 = vmatprep.subr.mxu0 0.0
    %1207 = vmatpush1.msra.mxu0 %v132
    %1208 = vmatprep.subr.mxu0 0.0
    %1209 = vmatpush1.msra.mxu0 %v131
    %1210 = vmatprep.subr.mxu0 0.0
    %1211 = vmatpush1.msra.mxu0 %v130
    %1212 = vmatprep.subr.mxu0 0.0
    %1213 = vmatpush1.msra.mxu0 %v129
    %1214 = vmatprep.subr.mxu0 0.0
    %1215 = vmatpush1.msra.mxu0 %v128
    %1216 = vmatprep.subr.mxu0 0.0
    %1217 = vmatpush1.msra.mxu0 %v127
    %1218 = vmatprep.subr.mxu0 0.0
    %1219 = vmatpush1.msra.mxu0 %v126
    %1220 = vmatprep.subr.mxu0 0.0
    %1221 = vmatpush1.msra.mxu0 %v125
    %1222 = vmatprep.subr.mxu0 0.0
    %1223 = vmatpush1.msra.mxu0 %v124
    %1224 = vmatprep.subr.mxu0 0.0
    %1225 = vmatpush1.msra.mxu0 %v123
    %1226 = vmatprep.subr.mxu0 0.0
    %1227 = vmatpush1.msra.mxu0 %v122
    %1228 = vmatprep.subr.mxu0 0.0
    %1229 = vmatpush2.msra.mxu0 %v153
    %1230 = vmatprep.subr.mxu0 0.0
    %1231 = vmatpush2.msra.mxu0 %v152
    %1232 = vmatprep.subr.mxu0 0.0
    %1233 = vmatpush2.msra.mxu0 %v151
    %1234 = vmatprep.subr.mxu0 0.0
    %1235 = vmatpush2.msra.mxu0 %v150
    %1236 = vmatprep.subr.mxu0 0.0
    %1237 = vmatpush2.msra.mxu0 %v149
    %1238 = vmatprep.subr.mxu0 0.0
    %1239 = vmatpush2.msra.mxu0 %v148
    %1240 = vmatprep.subr.mxu0 0.0
    %1241 = vmatpush2.msra.mxu0 %v147
    %1242 = vmatprep.subr.mxu0 0.0
    %1243 = vmatpush2.msra.mxu0 %v146
    %1244 = vmatprep.subr.mxu0 0.0
    %1245 = vmatpush2.msra.mxu0 %v145
    %1246 = vmatprep.subr.mxu0 0.0
    %1247 = vmatpush2.msra.mxu0 %v144
    %1248 = vmatprep.subr.mxu0 0.0
    %1249 = vmatpush2.msra.mxu0 %v143
    %1250 = vmatprep.subr.mxu0 0.0
    %1251 = vmatpush2.msra.mxu0 %v142
    %1252 = vmatprep.subr.mxu0 0.0
    %1253 = vmatpush2.msra.mxu0 %v141
    %1254 = vmatprep.subr.mxu0 0.0
    %1255 = vmatpush2.msra.mxu0 %v140
    %1256 = vmatprep.subr.mxu0 0.0
    %1257 = vmatpush2.msra.mxu0 %v139
    %1258 = vmatprep.subr.mxu0 0.0
    %1259 = vmatpush2.msra.mxu0 %v138
    %1260 = vmatprep.mubr.f32.mxu0 %v1193
    %1261 = vmatmul.mubr.f32.gmra.mxu0 %v1192
    %v1262 = vpop.f32.mrf.mxu0
    %v1263 = vadd.f32 0.0, %v1262
    %v1264 = vpop.f32.mrf.mxu0
    %1265 = vmatprep.mubr.f32.mxu0 %v1195
    %1266 = vmatmul.mubr.f32.gmra.mxu0 %v1194
    %v1267 = vpop.f32.mrf.mxu0
    %v1268 = vadd.f32 0.0, %v1267
    %v1269 = vpop.f32.mrf.mxu0
    %1270 = vdwg.mxu0
    %v1272 = vsel %vm1030, %v1263, 0
    %v1275 = vsel %vm1030, %v1268, 0
    %1277 = vmatprep.subr.mxu0 0.0
    %1278 = vmatpush1.msra.mxu0 0.0
    %1279 = vmatprep.subr.mxu0 0.0
    %1280 = vmatpush1.msra.mxu0 0.0
    %1281 = vmatprep.subr.mxu0 0.0
    %1282 = vmatpush1.msra.mxu0 0.0
    %1283 = vmatprep.subr.mxu0 0.0
    %1284 = vmatpush1.msra.mxu0 0.0
    %1285 = vmatprep.subr.mxu0 0.0
    %1286 = vmatpush1.msra.mxu0 0.0
    %1287 = vmatprep.subr.mxu0 0.0
    %1288 = vmatpush1.msra.mxu0 0.0
    %1289 = vmatprep.subr.mxu0 0.0
    %1290 = vmatpush1.msra.mxu0 0.0
    %1291 = vmatprep.subr.mxu0 0.0
    %1292 = vmatpush1.msra.mxu0 0.0
    %1293 = vmatprep.subr.mxu0 0.0
    %1294 = vmatpush1.msra.mxu0 0.0
    %1295 = vmatprep.subr.mxu0 0.0
    %1296 = vmatpush1.msra.mxu0 0.0
    %1297 = vmatprep.subr.mxu0 0.0
    %1298 = vmatpush1.msra.mxu0 0.0
    %1299 = vmatprep.subr.mxu0 0.0
    %1300 = vmatpush1.msra.mxu0 0.0
    %1301 = vmatprep.subr.mxu0 0.0
    %1302 = vmatpush1.msra.mxu0 0.0
    %1303 = vmatprep.subr.mxu0 0.0
    %1304 = vmatpush1.msra.mxu0 0.0
    %1305 = vmatprep.subr.mxu0 %v1159
    %1306 = vmatpush1.msra.mxu0 %v1158
    %1307 = vmatprep.subr.mxu0 %v1157
    %1308 = vmatpush1.msra.mxu0 %v1156
    %1309 = vmatprep.subr.mxu0 0.0
    %1310 = vmatpush2.msra.mxu0 0.0
    %1311 = vmatprep.subr.mxu0 0.0
    %1312 = vmatpush2.msra.mxu0 0.0
    %1313 = vmatprep.subr.mxu0 0.0
    %1314 = vmatpush2.msra.mxu0 0.0
    %1315 = vmatprep.subr.mxu0 0.0
    %1316 = vmatpush2.msra.mxu0 0.0
    %1317 = vmatprep.subr.mxu0 0.0
    %1318 = vmatpush2.msra.mxu0 0.0
    %1319 = vmatprep.subr.mxu0 0.0
    %1320 = vmatpush2.msra.mxu0 0.0
    %1321 = vmatprep.subr.mxu0 0.0
    %1322 = vmatpush2.msra.mxu0 0.0
    %1323 = vmatprep.subr.mxu0 0.0
    %1324 = vmatpush2.msra.mxu0 0.0
    %1325 = vmatprep.subr.mxu0 0.0
    %1326 = vmatpush2.msra.mxu0 0.0
    %1327 = vmatprep.subr.mxu0 0.0
    %1328 = vmatpush2.msra.mxu0 0.0
    %1329 = vmatprep.subr.mxu0 0.0
    %1330 = vmatpush2.msra.mxu0 0.0
    %1331 = vmatprep.subr.mxu0 0.0
    %1332 = vmatpush2.msra.mxu0 0.0
    %1333 = vmatprep.subr.mxu0 0.0
    %1334 = vmatpush2.msra.mxu0 0.0
    %1335 = vmatprep.subr.mxu0 0.0
    %1336 = vmatpush2.msra.mxu0 0.0
    %1337 = vmatprep.subr.mxu0 0.0
    %1338 = vmatpush2.msra.mxu0 0.0
    %1339 = vmatprep.subr.mxu0 0.0
    %1340 = vmatpush2.msra.mxu0 0.0
    %1341 = vmatprep.mubr.f32.mxu0 0.0
    %1342 = vmatmul.mubr.f32.gmra.mxu0 %v1272
    %v1343 = vpop.f32.mrf.mxu0
    %v1344 = vadd.f32 0.0, %v1343
    %v1345 = vpop.f32.mrf.mxu0
    %v1346 = vadd.f32 0.0, %v1345
    %1347 = vmatprep.mubr.f32.mxu0 0.0
    %1348 = vmatmul.mubr.f32.gmra.mxu0 %v1275
    %v1349 = vpop.f32.mrf.mxu0
    %v1350 = vadd.f32 0.0, %v1349
    %v1351 = vpop.f32.mrf.mxu0
    %v1352 = vadd.f32 0.0, %v1351
    %1353 = vdwg.mxu0
    %v1354 = vmul.f32 %v1180, %v1344
    %v1355 = vmul.f32 %v1181, %v1346
    %v1356 = vmul.f32 %v1182, %v1350
    %v1357 = vmul.f32 %v1183, %v1352
    %v1358 = vadd.f32 %v1354, %v1356
    %v1359 = vrot.slane %v1358, 4
    %v1360 = vadd.f32 %v1358, %v1359
    %v1361 = vrot.slane %v1360, 2
    %v1362 = vadd.f32 %v1360, %v1361
    %v1363 = vrot.slane %v1362, 1
    %v1364 = vadd.f32 %v1362, %v1363
    %v1365 = vadd.f32 %v1355, %v1357
    %v1366 = vrot.slane %v1365, 4
    %v1367 = vadd.f32 %v1365, %v1366
    %v1368 = vrot.slane %v1367, 2
    %v1369 = vadd.f32 %v1367, %v1368
    %v1370 = vrot.slane %v1369, 1
    %v1371 = vadd.f32 %v1369, %v1370
    %v1372 = vmax.f32 %v1364, 1e-06
    %v1373 = vmax.f32 %v1371, 1e-06
    %v1374 = vmin.f32 %v1372, 0.999999
    %v1375 = vmin.f32 %v1373, 0.999999
    %vm1376 = vcmask 1040384
    %v1377 = vsel %vm1376, %v1134, %v1374
    %v1378 = vsel %vm1376, %v1135, %v1375
    %v1381 = vcombine.low %v1377, %v1378
    %v1383 = vunpack.c.l.s4 1983009808
    %v1384 = vunpack.c.0.s8 %v1383
    %v1385 = vlaneseq
    %v1386 = vshrl.u32 %v1385, 7
    %v1387 = vsub.s32 %v1384, %v1386
    %v1388 = vrot.slane %v1381, %v1387
    %1390 = vst [vmem:[%s7] sm:$0xf] %v1388
    // Predicated region
    $region30: #{stvae_forward.1} parent=1 // pred_check
      _
    $region31: #{stvae_forward.1} parent=1 // pred_check_branch
      %1392 = sbr.rel (0) target = $region33
    $region32: #{stvae_forward.1} parent=1 // pred_region
      _
    $region33: #{stvae_forward.1} parent=1 // pred_fallthru
      _
    // Predicated region
    $region34: #{stvae_forward.1} parent=1 // pred_check
      _
    $region35: #{stvae_forward.1} parent=1 // pred_check_branch
      %1394 = sbr.rel (0) target = $region37
    $region36: #{stvae_forward.1} parent=1 // pred_region
      _
    $region37: #{stvae_forward.1} parent=1 // pred_fallthru
      _
    // Predicated region
    $region38: #{stvae_forward.1} parent=1 // pred_check
      _
    $region39: #{stvae_forward.1} parent=1 // pred_check_branch
      %1396 = sbr.rel (0) target = $region41
    $region40: #{stvae_forward.1} parent=1 // pred_region
      %s1398 = ssub.s32 16, 16
      %1399 = vsyncadd [#allocation3], %s1398
      %1402 = dma.smem_to_hbm [#allocation2], 16, %s9, [#allocation3]
    $region41: #{stvae_forward.1} parent=1 // pred_fallthru
      _
    // Predicated region
    $region42: #{stvae_forward.1} parent=1 // pred_check
      _
    $region43: #{stvae_forward.1} parent=1 // pred_check_branch
      %1404 = sbr.rel (0) target = $region45
    $region44: #{stvae_forward.1} parent=1 // pred_region
      %s1406 = ssub.s32 16, 16
      %1407 = vsyncadd [#allocation5], %s1406
      %1410 = dma.smem_to_hbm [#allocation4], 16, %s10, [#allocation5]
    $region45: #{stvae_forward.1} parent=1 // pred_fallthru
      _
    // Predicated region
    $region46: #{stvae_forward.1} parent=1 // pred_check
      _
    $region47: #{stvae_forward.1} parent=1 // pred_check_branch
      %1412 = sbr.rel (0) target = $region49
    $region48: #{stvae_forward.1} parent=1 // pred_region
      _
    $region49: #{stvae_forward.1} parent=1 // pred_fallthru
      _
    // Predicated region
    $region50: #{stvae_forward.1} parent=1 // pred_check
      _
    $region51: #{stvae_forward.1} parent=1 // pred_check_branch
      %1414 = sbr.rel (0) target = $region53
    $region52: #{stvae_forward.1} parent=1 // pred_region
      _
    $region53: #{stvae_forward.1} parent=1 // pred_fallthru
      _
    // Predicated region
    $region54: #{stvae_forward.1} parent=1 // pred_check
      _
    $region55: #{stvae_forward.1} parent=1 // pred_check_branch
      %1416 = sbr.rel (0) target = $region57
    $region56: #{stvae_forward.1} parent=1 // pred_region
      %1417 = dma.done [#allocation3], 16
    $region57: #{stvae_forward.1} parent=1 // pred_fallthru
      _
    // Predicated region
    $region58: #{stvae_forward.1} parent=1 // pred_check
      _
    $region59: #{stvae_forward.1} parent=1 // pred_check_branch
      %1419 = sbr.rel (0) target = $region61
    $region60: #{stvae_forward.1} parent=1 // pred_region
      %1420 = dma.done [#allocation5], 16
    $region61: #{stvae_forward.1} parent=1 // pred_fallthru
      _
    %1421 = sfence
    %1422 = vsyncpa [#allocation3], 1
    %1423 = vsyncpa [#allocation5], 1

</llo_original>
